<compile_context>
chip_gen: v7x
topology: tpu7x:2x2x1
jax: 0.10.0
libtpu: 0.0.40
codegen_flags: <defaults>
</compile_context>

<pallas_src>
import math

import jax
import jax.numpy as jnp
import numpy as np
from jax.experimental import pallas as pl
from jax.experimental.pallas import tpu as pltpu


def _choose_num_tiles(F, H, prefer=2):
    """Prefer 2 grid steps (one wp tile per TensorCore on v7x megacore; near
    optimal on single-core v5e/v6e too).  Fall back to a single untiled step
    if the (8,128)-friendly divisibility does not hold."""
    if H % prefer == 0:
        th = H // prefer
        if th % 8 == 0 and (F * th) % 128 == 0:
            return prefer, th
    return 1, H


def _proj_head_kernel(feat_ref, h_ref, wp_ref, v_ref):
    """proj 1x1-conv tile (MXU, bf16 weight stream) + head contraction.

    Per grid step n this computes columns [n*TN, (n+1)*TN) of h @ wp^T (flat
    column index = h_out * F + f), then reduces over f against the pre-ReLU
    conv features:  v[b, h_out] = sum_f proj3[b, h_out, f] * feat[b, f].
    """
    B, F = feat_ref.shape
    TN = wp_ref.shape[1]
    TH = TN // F                                  # h_out rows owned by this step

    # bf16 x bf16 -> f32 accumulate on the MXU; the (B,H) cast is free.
    proj = jnp.dot(h_ref[...].astype(jnp.bfloat16), wp_ref[...],
                   preferred_element_type=jnp.float32)          # (B, TN)

    proj3 = proj.reshape(B, TH, F)
    v_ref[0] = jnp.sum(proj3 * feat_ref[...][:, None, :], axis=-1)  # (B, TH)


def pack_params(params):
    """One-time parameter plumbing, done at model-load time (OUTSIDE jit):
    transposes, the bih+bhh fold, and the bf16 cast of the streamed proj
    weight.  whh is dropped on purpose (hidden=None specialisation)."""
    wc, wih, whh, bih, bhh, wp, wfc = params
    del whh  # h0 = 0 -> the h0 @ Whh term is exactly zero.
    f32 = jnp.float32
    wc_t = jnp.asarray(wc.T, f32)                       # (C, F)
    wih_t = jnp.asarray(wih.T, f32)                     # (F, 4H)
    bias = (bih + bhh).reshape(1, -1).astype(f32)       # (1, 4H)
    wp_t_bf16 = jnp.asarray(wp.T, jnp.bfloat16)         # (H, F*H); col = h_out*F + f
    wfc_t = jnp.asarray(wfc.T, f32)                     # (H, A)
    return (wc_t, wih_t, bias, wp_t_bf16, wfc_t)


def policy_net_forward(x, packed):
    """Returns (logits, (h_n, c_n)) matching PolicyNet.forward semantics for
    the first call (self.hidden is None -> zero initial state)."""
    wc_t, wih_t, bias, wp_t_bf16, wfc_t = packed
    if x.ndim == 1:                      # PyTorch 1-D input case -> bsz = 1
        x = x[None, :]
    B = x.shape[0]
    F = wc_t.shape[1]
    H = wp_t_bf16.shape[0]
    f32 = jnp.float32

    # ---- tiny front-end in plain XLA: 1x1 conv (no bias) -> ReLU -> LSTM cell.
    # hidden=None specialisation: h0 = c0 = 0, so Whh and f_gate * c0 drop out.
    # TODO(synk): recurrent calls with a nonzero carried (h0, c0) need the full
    # LSTM cell (Whh matmul + forget-gate term); only the first-call path is
    # implemented here, matching the module's behaviour when self.hidden is None.
    feat = jnp.dot(x.astype(f32), wc_t)                      # (B, F) pre-ReLU (orig_feat)
    r = jnp.maximum(feat, 0.0)
    gates = jnp.dot(r, wih_t) + bias                         # (B, 4H), gate order (i,f,g,o)
    i_g = jax.nn.sigmoid(gates[:, 0:H])
    g_g = jnp.tanh(gates[:, 2 * H:3 * H])
    o_g = jax.nn.sigmoid(gates[:, 3 * H:4 * H])
    c = i_g * g_g                                            # (B, H)
    h = o_g * jnp.tanh(c)                                    # (B, H)

    num_tiles, TH = _choose_num_tiles(F, H)
    TN = F * TH

    cost = pl.CostEstimate(
        flops=int(2 * B * H * F * H        # proj matmul (dominant)
                  + 2 * B * H * F),        # head contraction
        transcendentals=0,                 # LSTM moved out of the kernel
        bytes_accessed=int(2 * wp_t_bf16.size                 # bf16 weight stream
                           + 4 * (feat.size + h.size + B * H)),
    )

    v_tiles = pl.pallas_call(
        _proj_head_kernel,
        grid=(num_tiles,),
        in_specs=[
            pl.BlockSpec((B, F), lambda n: (0, 0)),           # feat (pre-ReLU conv out)
            pl.BlockSpec((B, H), lambda n: (0, 0)),           # h (LSTM output)
            pl.BlockSpec((H, TN), lambda n: (0, n)),          # wp^T tile, bf16
        ],
        out_specs=pl.BlockSpec((1, B, TH), lambda n: (n, 0, 0)),
        out_shape=jax.ShapeDtypeStruct((num_tiles, B, TH), f32),
        compiler_params=pltpu.CompilerParams(
            dimension_semantics=("parallel",),                # v7x: one tile per TC
            vmem_limit_bytes=16 * 1024 * 1024,
        ),
        cost_estimate=cost,
    )(feat, h, wp_t_bf16)

    # Reassemble v: v_tiles[n, b, j] is h_out = n*TH + j.  Tiny (2,B,TH) op.
    v = jnp.transpose(v_tiles, (1, 0, 2)).reshape(B, H)       # (B, H)
    # Tiny fc (1x1 conv hidden -> num_actions) left to XLA on purpose.
    logits = jnp.squeeze(jnp.dot(v, wfc_t))                   # torch .squeeze()
    hidden = (h[None], c[None])                               # (num_layers=1, B, H)
    return logits, hidden


def reference_forward(x, params):
    """Pure-JAX (all-f32) reference of PolicyNet.forward (hidden=None first call)."""
    wc, wih, whh, bih, bhh, wp, wfc = params
    B = x.shape[0]
    F = wc.shape[0]
    H = whh.shape[1]
    feat = x @ wc.T                         # conv (orig_feat, pre-ReLU)
    r = jnp.maximum(feat, 0.0)
    h0 = jnp.zeros((B, H), jnp.float32)
    c0 = jnp.zeros((B, H), jnp.float32)
    gates = r @ wih.T + bih + h0 @ whh.T + bhh
    i = jax.nn.sigmoid(gates[:, :H])
    f = jax.nn.sigmoid(gates[:, H:2 * H])
    g = jnp.tanh(gates[:, 2 * H:3 * H])
    o = jax.nn.sigmoid(gates[:, 3 * H:])
    c = f * c0 + i * g
    h = o * jnp.tanh(c)
    proj = h @ wp.T
    proj3 = proj.reshape(B, H, F)
    v = jnp.einsum('bhf,bf->bh', proj3, feat)
    logits = v @ wfc.T
    return jnp.squeeze(logits), (h[None], c[None])


if __name__ == "__main__":
    # Small shapes consistent with the module (1x1 spatial; defaults F=64, H=128, A=2)
    B, C, F, H, A = 4, 16, 64, 128, 2
    f32 = jnp.float32
    key = jax.random.PRNGKey(0)
    ks = jax.random.split(key, 8)

    # Conv2d weights: normal(0, sqrt(2 / out_channels)) (kernel 1x1, no bias)
    wc = (jax.random.normal(ks[0], (F, C)) * math.sqrt(2.0 / F)).astype(f32)
    wp = (jax.random.normal(ks[1], (F * H, H)) * math.sqrt(2.0 / (F * H))).astype(f32)
    wfc = (jax.random.normal(ks[2], (A, H)) * math.sqrt(2.0 / A)).astype(f32)
    # LSTM params: default U(-1/sqrt(H), 1/sqrt(H)), gate order (i, f, g, o)
    bound = 1.0 / math.sqrt(H)
    wih = jax.random.uniform(ks[3], (4 * H, F), minval=-bound, maxval=bound).astype(f32)
    whh = jax.random.uniform(ks[4], (4 * H, H), minval=-bound, maxval=bound).astype(f32)
    bih = jax.random.uniform(ks[5], (4 * H,), minval=-bound, maxval=bound).astype(f32)
    bhh = jax.random.uniform(ks[6], (4 * H,), minval=-bound, maxval=bound).astype(f32)

    x = jax.random.normal(ks[7], (B, C), dtype=f32)
    params = (wc, wih, whh, bih, bhh, wp, wfc)

    # One-time weight packing (transpose / bias fold / bf16 cast) OUTSIDE jit.
    packed = jax.tree_util.tree_map(jax.block_until_ready, pack_params(params))

    fwd = jax.jit(policy_net_forward)
    out = jax.block_until_ready(fwd(x, packed))
    logits, (h_n, c_n) = out

    ref_logits, (ref_h, ref_c) = reference_forward(x, params)
    # h/c are computed fully in f32 -> tight; logits go through the bf16
    # weight stream -> loose (bf16 relative error ~0.4%, well inside 2e-2).
    np.testing.assert_allclose(np.asarray(h_n), np.asarray(ref_h),
                               rtol=1e-4, atol=1e-5)
    np.testing.assert_allclose(np.asarray(c_n), np.asarray(ref_c),
                               rtol=1e-4, atol=1e-5)
    np.testing.assert_allclose(np.asarray(logits), np.asarray(ref_logits),
                               rtol=2e-2, atol=1e-2)
    print("KERNEL_OK")
</pallas_src>

<mosaic_0001>
module attributes {stable_mosaic.version = 11 : i64} {
  func.func @_proj_head_kernel(%arg0: i32, %arg1: memref<4x64xf32, #tpu.memory_space<vmem>>, %arg2: memref<4x128xf32, #tpu.memory_space<vmem>>, %arg3: memref<128x4096xbf16, #tpu.memory_space<vmem>>, %arg4: memref<1x4x64xf32, #tpu.memory_space<vmem>>) attributes {dimension_semantics = [#tpu.dimension_semantics<parallel>], iteration_bounds = array<i64: 2>, scalar_prefetch = 0 : i64, scratch_operands = 0 : i64, tpu.core_type = #tpu.core_type<tc>, window_params = [{pipeline_mode = #tpu.pipeline_mode<synchronous>, transform_indices = @transform_0, window_bounds = array<i64: 4, 64>}, {pipeline_mode = #tpu.pipeline_mode<synchronous>, transform_indices = @transform_1, window_bounds = array<i64: 4, 128>}, {transform_indices = @transform_2, window_bounds = array<i64: 128, 4096>}, {transform_indices = @transform_3, window_bounds = array<i64: 1, 4, 64>}]} {
    %c0 = arith.constant 0 : index
    %c0_0 = arith.constant 0 : index
    %0 = vector.load %arg2[%c0, %c0_0] : memref<4x128xf32, #tpu.memory_space<vmem>>, vector<4x128xf32>
    %1 = arith.truncf %0 : vector<4x128xf32> to vector<4x128xbf16>
    %c0_1 = arith.constant 0 : index
    %c0_2 = arith.constant 0 : index
    %2 = vector.load %arg3[%c0_1, %c0_2] : memref<128x4096xbf16, #tpu.memory_space<vmem>>, vector<128x4096xbf16>
    %cst = arith.constant dense<0.000000e+00> : vector<4x4096xf32>
    %3 = tpu.matmul %1, %2, %cst {dimension_numbers = #tpu.dot_dimension_numbers<[1], [0], [0], [1], [0, 0, 1, 1], [], []>} : vector<4x128xbf16>, vector<128x4096xbf16>, vector<4x4096xf32> -> vector<4x4096xf32>
    %4 = vector.shape_cast %3 : vector<4x4096xf32> to vector<4x64x64xf32>
    %c0_3 = arith.constant 0 : index
    %c0_4 = arith.constant 0 : index
    %5 = vector.load %arg1[%c0_3, %c0_4] : memref<4x64xf32, #tpu.memory_space<vmem>>, vector<4x64xf32>
    %6 = vector.shape_cast %5 : vector<4x64xf32> to vector<4x1x64xf32>
    %7 = vector.broadcast %6 : vector<4x1x64xf32> to vector<4x64x64xf32>
    %8 = arith.mulf %4, %7 : vector<4x64x64xf32>
    %cst_5 = arith.constant dense<0.000000e+00> : vector<4x64xf32>
    %9 = vector.multi_reduction <add>, %8, %cst_5 [2] : vector<4x64x64xf32> to vector<4x64xf32>
    %c0_6 = arith.constant 0 : index
    %c0_7 = arith.constant 0 : index
    %c0_8 = arith.constant 0 : index
    %10 = vector.load %arg4[%c0_6, %c0_7, %c0_8] : memref<1x4x64xf32, #tpu.memory_space<vmem>>, vector<1x4x64xf32>
    %11 = vector.shape_cast %10 : vector<1x4x64xf32> to vector<4x64xf32>
    %12 = vector.shape_cast %9 : vector<4x64xf32> to vector<1x4x64xf32>
    tpu.vector_store %arg4[%c0_6, %c0_7, %c0_8], %12 {strides = array<i32>} : memref<1x4x64xf32, #tpu.memory_space<vmem>>, vector<1x4x64xf32>,
    return
  }
  func.func @transform_0(%arg0: i32) -> (i32, i32) {
    %c0_i32 = arith.constant 0 : i32
    %c0_i32_0 = arith.constant 0 : i32
    %c0_i32_1 = arith.constant 0 : i32
    return %c0_i32, %c0_i32_0 : i32, i32
  }
  func.func @transform_1(%arg0: i32) -> (i32, i32) {
    %c0_i32 = arith.constant 0 : i32
    %c0_i32_0 = arith.constant 0 : i32
    %c0_i32_1 = arith.constant 0 : i32
    return %c0_i32, %c0_i32_0 : i32, i32
  }
  func.func @transform_2(%arg0: i32) -> (i32, i32) {
    %c0_i32 = arith.constant 0 : i32
    %c0_i32_0 = arith.constant 0 : i32
    return %c0_i32, %arg0 : i32, i32
  }
  func.func @transform_3(%arg0: i32) -> (i32, i32, i32) {
    %c0_i32 = arith.constant 0 : i32
    %c0_i32_0 = arith.constant 0 : i32
    %c0_i32_1 = arith.constant 0 : i32
    return %arg0, %c0_i32, %c0_i32_0 : i32, i32, i32
  }
}

</mosaic_0001>

<llo_original>
// kernel: policy_net_forward.1
$region0: #{policy_net_forward.1}
  #allocation0 [shape = 'u32[]', space=smem, size = 0x4, offset = 0x4, fixed_abs, tag = 'smem constant byte address 0x4 - core index']
  #allocation1 [shape = 'u32[144,128]{1,0:T(1,128)}', space=vmem, size = 0x12000, scoped, tag = 'internal scratch']
  %s0 = inlined_call_operand.vmem [shape: f32[4,64], index: 0, kind: input, shape index: {}]
  %s1 = inlined_call_operand.vmem [shape: f32[4,128], index: 1, kind: input, shape index: {}]
  %s2 = inlined_call_operand.hbm [shape: bf16[128,8192], index: 2, kind: input, shape index: {}]
  %s3 = inlined_call_operand.vmem [shape: f32[2,4,64], index: 3, kind: output, shape index: {}]
  %s4 = sld [smem:[#allocation0]]
  $region49: #{policy_net_forward.1} parent=0
    _
  %s6 = ssub.s32 1, %s4
  %s7 = scalar_select 0, %s6, %s4
  $region1: #{policy_net_forward.1} parent=0
    #allocation2 [shape = 'u8[2097152]{0}', space=vmem, size = 0x200000, scoped, tag = 'input window, operand 2']
    #allocation3 [shape = 's32[2]{0}', space=sflag, size = 0x8, scoped, tag = 'scoped memory for policy_net_forward.1']
    %8 = vsyncpa [#allocation3], 0
    %s9 = scalar_lea.sflag [#allocation3], 1
    %10 = vsyncpa %s9, 0
    loop: start=0, step=1, limit=4
    $region2: #{policy_net_forward.1} parent=1 // loop_pre_header
      _
    $region3: #{policy_net_forward.1} parent=1 // loop_header
      %s12 = sphi 0, %s16
      %p13 = scmp.ge.s32.totalorder %s12, 4
      %s20 = sphi 0, %s20
      %s22 = sphi 0, %s20
      %s23 = sphi 0, %s22
      %s37 = sphi 0, %s23
      %s41 = sphi 0, %s41
      %s43 = sphi 0, %s41
      %s44 = sphi 0, %s43
      %s58 = sphi 0, %s44
      %s64 = sphi 0, %s66
      %s67 = sphi 0, %s64
      %s68 = sphi 0, %s67
      %s84 = sphi 0, %s68
      %s90 = sphi 0, %s92
      %s93 = sphi 0, %s90
      %s94 = sphi 0, %s93
      %s110 = sphi 0, %s94
    $region4: #{policy_net_forward.1} parent=1 // loop_header_branch
      %15 = sbr.rel (%p13) target = $region8
    $region5: #{policy_net_forward.1} parent=1 // loop_body
      %s17 = ssub.s32 %s12, 1
      %s18 = ssub.s32 %s12, 2
      %s19 = sadd.s32 %s12, 1
      %s21 = sadd.s32 %s20, 1
      %p24 = scmp.eq.s32.totalorder %s12, 1
      %p25 = scmp.ne.s32.totalorder %s20, %s22
      %p26 = scmp.eq.s32.totalorder %s12, 0
      %p27 = por %p25, %p26
      %p28 = scmp.ne.s32.totalorder %s20, %s22
      %p29 = scmp.eq.s32.totalorder %s17, 1
      %p30 = por %p28, %p29
      %p31 = scmp.ne.s32.totalorder %s22, %s23
      %p32 = scmp.eq.s32.totalorder %s17, 0
      %p33 = por %p31, %p32
      %p34 = scmp.ne.s32.totalorder %s22, %s23
      %p35 = scmp.eq.s32.totalorder %s18, 1
      %p36 = por %p34, %p35
      %p38 = scmp.ne.s32.totalorder %s23, %s37
      %p39 = scmp.eq.s32.totalorder %s18, 0
      %p40 = por %p38, %p39
      %s42 = sadd.s32 %s41, 1
      %p45 = scmp.eq.s32.totalorder %s12, 1
      %p46 = scmp.ne.s32.totalorder %s41, %s43
      %p47 = scmp.eq.s32.totalorder %s12, 0
      %p48 = por %p46, %p47
      %p49 = scmp.ne.s32.totalorder %s41, %s43
      %p50 = scmp.eq.s32.totalorder %s17, 1
      %p51 = por %p49, %p50
      %p52 = scmp.ne.s32.totalorder %s43, %s44
      %p53 = scmp.eq.s32.totalorder %s17, 0
      %p54 = por %p52, %p53
      %p55 = scmp.ne.s32.totalorder %s43, %s44
      %p56 = scmp.eq.s32.totalorder %s18, 1
      %p57 = por %p55, %p56
      %p59 = scmp.ne.s32.totalorder %s44, %s58
      %p60 = scmp.eq.s32.totalorder %s18, 0
      %p61 = por %p59, %p60
      %s62 = ssub.s32 %s12, %s19
      %p63 = scmp.eq.s32.totalorder %s62, 0
      %s65 = sadd.s32 %s64, 1
      %s66 = scalar_select %p63, %s64, %s65
      %p69 = pneg %p63
      %p70 = scmp.eq.s32.totalorder %s12, 1
      %p71 = por %p69, %p70
      %p72 = scmp.ne.s32.totalorder %s64, %s67
      %p73 = scmp.eq.s32.totalorder %s12, 0
      %p74 = por %p72, %p73
      %p75 = scmp.ne.s32.totalorder %s64, %s67
      %p76 = scmp.eq.s32.totalorder %s17, 1
      %p77 = por %p75, %p76
      %p78 = scmp.ne.s32.totalorder %s67, %s68
      %p79 = scmp.eq.s32.totalorder %s17, 0
      %p80 = por %p78, %p79
      %p81 = scmp.ne.s32.totalorder %s67, %s68
      %p82 = scmp.eq.s32.totalorder %s18, 1
      %p83 = por %p81, %p82
      %p85 = scmp.ne.s32.totalorder %s68, %s84
      %p86 = scmp.eq.s32.totalorder %s18, 0
      %p87 = por %p85, %p86
      %s88 = ssub.s32 %s12, %s19
      %p89 = scmp.eq.s32.totalorder %s88, 0
      %s91 = sadd.s32 %s90, 1
      %s92 = scalar_select %p89, %s90, %s91
      %p95 = pneg %p89
      %p96 = scmp.eq.s32.totalorder %s12, 1
      %p97 = por %p95, %p96
      %p98 = scmp.ne.s32.totalorder %s90, %s93
      %p99 = scmp.eq.s32.totalorder %s12, 0
      %p100 = por %p98, %p99
      %p101 = scmp.ne.s32.totalorder %s90, %s93
      %p102 = scmp.eq.s32.totalorder %s17, 1
      %p103 = por %p101, %p102
      %p104 = scmp.ne.s32.totalorder %s93, %s94
      %p105 = scmp.eq.s32.totalorder %s17, 0
      %p106 = por %p104, %p105
      %p107 = scmp.ne.s32.totalorder %s93, %s94
      %p108 = scmp.eq.s32.totalorder %s18, 1
      %p109 = por %p107, %p108
      %p111 = scmp.ne.s32.totalorder %s94, %s110
      %p112 = scmp.eq.s32.totalorder %s18, 0
      %p113 = por %p111, %p112
      %p114 = scmp.le.s32.totalorder 1, %s12
      %p115 = scmp.lt.s32.totalorder %s12, 3
      %p116 = pnand %p114, %p115
      %p117 = pneg %p116
      // Predicated region
      $region9: #{policy_net_forward.1} parent=5 // pred_check
        _
      $region10: #{policy_net_forward.1} parent=5 // pred_check_branch
        %119 = sbr.rel (%p116) target = $region12
      $region11: #{policy_net_forward.1} parent=5 // pred_region
        %s120 = ssub.s32 %s12, 1
        // Predicated region
        $region13: #{policy_net_forward.1} parent=11 // pred_check
          %p121 = pneg %p33
        $region14: #{policy_net_forward.1} parent=11 // pred_check_branch
          %123 = sbr.rel (%p121) target = $region16
        $region15: #{policy_net_forward.1} parent=11 // pred_region
          _
        $region16: #{policy_net_forward.1} parent=11 // pred_fallthru
          _
        // Predicated region
        $region17: #{policy_net_forward.1} parent=11 // pred_check
          %p124 = pneg %p54
        $region18: #{policy_net_forward.1} parent=11 // pred_check_branch
          %126 = sbr.rel (%p124) target = $region20
        $region19: #{policy_net_forward.1} parent=11 // pred_region
          _
        $region20: #{policy_net_forward.1} parent=11 // pred_fallthru
          _
      $region12: #{policy_net_forward.1} parent=5 // pred_fallthru
        _
      %p127 = scmp.lt.s32.totalorder %s12, 2
      // Predicated region
      $region21: #{policy_net_forward.1} parent=5 // pred_check
        %p128 = pneg %p127
      $region22: #{policy_net_forward.1} parent=5 // pred_check_branch
        %130 = sbr.rel (%p128) target = $region24
      $region23: #{policy_net_forward.1} parent=5 // pred_region
        // Predicated region
        $region25: #{policy_net_forward.1} parent=23 // pred_check
          %p131 = pneg %p74
        $region26: #{policy_net_forward.1} parent=23 // pred_check_branch
          %133 = sbr.rel (%p131) target = $region28
        $region27: #{policy_net_forward.1} parent=23 // pred_region
          %s134 = sand.u32 %s64, 1
          %s135 = scalar_lea.sflag [#allocation3], %s134
          %s136 = sand.u32 %s64, 1
          %s137 = smul.addr %s136, 2048
          %s138 = scalar_lea.vmem [#allocation2], %s137
          %s139 = smul.u32 32, %s12
          %s141 = ssub.s32 32768, 32768
          %142 = vsyncadd %s135, %s141
          %s143 = smul.addr %s139, 64
          %s144 = scalar_lea.hbm %s2, %s143
          %s145 = sshll.u32 %s138, 4
          %s146 = int_to_ptr.vmem [resolvable:$true] %s145
          %151 = dma.hbm_to_vmem [thread:$0]  %s144, 32768, %s146, %s135, 4096, 2048, 128
        $region28: #{policy_net_forward.1} parent=23 // pred_fallthru
          _
      $region24: #{policy_net_forward.1} parent=5 // pred_fallthru
        _
      %p152 = scmp.le.s32.totalorder 1, %s12
      %p153 = scmp.lt.s32.totalorder %s12, 3
      %p154 = pnand %p152, %p153
      %p155 = pneg %p154
      // Predicated region
      $region29: #{policy_net_forward.1} parent=5 // pred_check
        _
      $region30: #{policy_net_forward.1} parent=5 // pred_check_branch
        %157 = sbr.rel (%p154) target = $region32
      $region31: #{policy_net_forward.1} parent=5 // pred_region
        %s158 = ssub.s32 %s12, 1
        %s159 = sand.u32 %s67, 1
        %s160 = scalar_lea.sflag [#allocation3], %s159
        %s161 = sand.u32 %s67, 1
        %s162 = smul.addr %s161, 2048
        %s163 = scalar_lea.vmem [#allocation2], %s162
        // Predicated region
        $region33: #{policy_net_forward.1} parent=31 // pred_check
          %p164 = pneg %p80
        $region34: #{policy_net_forward.1} parent=31 // pred_check_branch
          %166 = sbr.rel (%p164) target = $region36
        $region35: #{policy_net_forward.1} parent=31 // pred_region
          %167 = dma.done %s160, 32768
        $region36: #{policy_net_forward.1} parent=31 // pred_fallthru
          _
        %p168 = pneg %p33
        %p169 = pneg %p30
        %p170 = pneg %p54
        %p171 = pneg %p51
        %s172 = sand.u32 %s67, 1
        %s173 = scalar_lea.sflag [#allocation3], %s172
        %s174 = sand.u32 %s67, 1
        %s175 = smul.addr %s174, 2048
        %s176 = scalar_lea.vmem [#allocation2], %s175
        %p177 = pneg %p80
        %p178 = pneg %p77
        %p179 = pneg %p106
        %p180 = pneg %p103
        %p181 = scmp.lt.s32.totalorder %s17, 1
        %s182 = scalar_select %p181, %s17, 1
        %s183 = smul.addr %s182, 4
        %s184 = scalar_lea.vmem %s3, %s183
        %s185 = smul.u32 32, %s17
        %p186 = scmp.lt.s32.totalorder %s17, 1
        %s187 = scalar_select %p186, %s17, 1
        %s188 = smul.addr %s187, 4
        %s189 = scalar_lea.vmem %s3, %s188
        %v191 = vld [vmem:[%s1] sm:$0xf]
        %v192 = vpack.c.bf16 %v191, %v191
        %v193 = vld [vmem:[%s163] sm:$0xff]
        %v194 = vld [vmem:[%s163 + $0x8] sm:$0xff]
        %v195 = vld [vmem:[%s163 + $0x10] sm:$0xff]
        %v196 = vld [vmem:[%s163 + $0x18] sm:$0xff]
        %v197 = vld [vmem:[%s163 + $0x20] sm:$0xff]
        %v198 = vld [vmem:[%s163 + $0x28] sm:$0xff]
        %v199 = vld [vmem:[%s163 + $0x30] sm:$0xff]
        %v200 = vld [vmem:[%s163 + $0x38] sm:$0xff]
        %v201 = vld [vmem:[%s163 + $0x40] sm:$0xff]
        %v202 = vld [vmem:[%s163 + $0x48] sm:$0xff]
        %v203 = vld [vmem:[%s163 + $0x50] sm:$0xff]
        %v204 = vld [vmem:[%s163 + $0x58] sm:$0xff]
        %v205 = vld [vmem:[%s163 + $0x60] sm:$0xff]
        %v206 = vld [vmem:[%s163 + $0x68] sm:$0xff]
        %v207 = vld [vmem:[%s163 + $0x70] sm:$0xff]
        %v208 = vld [vmem:[%s163 + $0x78] sm:$0xff]
        %v209 = vld [vmem:[%s163 + $0x80] sm:$0xff]
        %v210 = vld [vmem:[%s163 + $0x88] sm:$0xff]
        %v211 = vld [vmem:[%s163 + $0x90] sm:$0xff]
        %v212 = vld [vmem:[%s163 + $0x98] sm:$0xff]
        %v213 = vld [vmem:[%s163 + $0xa0] sm:$0xff]
        %v214 = vld [vmem:[%s163 + $0xa8] sm:$0xff]
        %v215 = vld [vmem:[%s163 + $0xb0] sm:$0xff]
        %v216 = vld [vmem:[%s163 + $0xb8] sm:$0xff]
        %v217 = vld [vmem:[%s163 + $0xc0] sm:$0xff]
        %v218 = vld [vmem:[%s163 + $0xc8] sm:$0xff]
        %v219 = vld [vmem:[%s163 + $0xd0] sm:$0xff]
        %v220 = vld [vmem:[%s163 + $0xd8] sm:$0xff]
        %v221 = vld [vmem:[%s163 + $0xe0] sm:$0xff]
        %v222 = vld [vmem:[%s163 + $0xe8] sm:$0xff]
        %v223 = vld [vmem:[%s163 + $0xf0] sm:$0xff]
        %v224 = vld [vmem:[%s163 + $0xf8] sm:$0xff]
        %v225 = vld [vmem:[%s163 + $0x100] sm:$0xff]
        %v226 = vld [vmem:[%s163 + $0x108] sm:$0xff]
        %v227 = vld [vmem:[%s163 + $0x110] sm:$0xff]
        %v228 = vld [vmem:[%s163 + $0x118] sm:$0xff]
        %v229 = vld [vmem:[%s163 + $0x120] sm:$0xff]
        %v230 = vld [vmem:[%s163 + $0x128] sm:$0xff]
        %v231 = vld [vmem:[%s163 + $0x130] sm:$0xff]
        %v232 = vld [vmem:[%s163 + $0x138] sm:$0xff]
        %v233 = vld [vmem:[%s163 + $0x140] sm:$0xff]
        %v234 = vld [vmem:[%s163 + $0x148] sm:$0xff]
        %v235 = vld [vmem:[%s163 + $0x150] sm:$0xff]
        %v236 = vld [vmem:[%s163 + $0x158] sm:$0xff]
        %v237 = vld [vmem:[%s163 + $0x160] sm:$0xff]
        %v238 = vld [vmem:[%s163 + $0x168] sm:$0xff]
        %v239 = vld [vmem:[%s163 + $0x170] sm:$0xff]
        %v240 = vld [vmem:[%s163 + $0x178] sm:$0xff]
        %v241 = vld [vmem:[%s163 + $0x180] sm:$0xff]
        %v242 = vld [vmem:[%s163 + $0x188] sm:$0xff]
        %v243 = vld [vmem:[%s163 + $0x190] sm:$0xff]
        %v244 = vld [vmem:[%s163 + $0x198] sm:$0xff]
        %v245 = vld [vmem:[%s163 + $0x1a0] sm:$0xff]
        %v246 = vld [vmem:[%s163 + $0x1a8] sm:$0xff]
        %v247 = vld [vmem:[%s163 + $0x1b0] sm:$0xff]
        %v248 = vld [vmem:[%s163 + $0x1b8] sm:$0xff]
        %v249 = vld [vmem:[%s163 + $0x1c0] sm:$0xff]
        %v250 = vld [vmem:[%s163 + $0x1c8] sm:$0xff]
        %v251 = vld [vmem:[%s163 + $0x1d0] sm:$0xff]
        %v252 = vld [vmem:[%s163 + $0x1d8] sm:$0xff]
        %v253 = vld [vmem:[%s163 + $0x1e0] sm:$0xff]
        %v254 = vld [vmem:[%s163 + $0x1e8] sm:$0xff]
        %v255 = vld [vmem:[%s163 + $0x1f0] sm:$0xff]
        %v256 = vld [vmem:[%s163 + $0x1f8] sm:$0xff]
        %v257 = vld [vmem:[%s163 + $0x200] sm:$0xff]
        %v258 = vld [vmem:[%s163 + $0x208] sm:$0xff]
        %v259 = vld [vmem:[%s163 + $0x210] sm:$0xff]
        %v260 = vld [vmem:[%s163 + $0x218] sm:$0xff]
        %v261 = vld [vmem:[%s163 + $0x220] sm:$0xff]
        %v262 = vld [vmem:[%s163 + $0x228] sm:$0xff]
        %v263 = vld [vmem:[%s163 + $0x230] sm:$0xff]
        %v264 = vld [vmem:[%s163 + $0x238] sm:$0xff]
        %v265 = vld [vmem:[%s163 + $0x240] sm:$0xff]
        %v266 = vld [vmem:[%s163 + $0x248] sm:$0xff]
        %v267 = vld [vmem:[%s163 + $0x250] sm:$0xff]
        %v268 = vld [vmem:[%s163 + $0x258] sm:$0xff]
        %v269 = vld [vmem:[%s163 + $0x260] sm:$0xff]
        %v270 = vld [vmem:[%s163 + $0x268] sm:$0xff]
        %v271 = vld [vmem:[%s163 + $0x270] sm:$0xff]
        %v272 = vld [vmem:[%s163 + $0x278] sm:$0xff]
        %v273 = vld [vmem:[%s163 + $0x280] sm:$0xff]
        %v274 = vld [vmem:[%s163 + $0x288] sm:$0xff]
        %v275 = vld [vmem:[%s163 + $0x290] sm:$0xff]
        %v276 = vld [vmem:[%s163 + $0x298] sm:$0xff]
        %v277 = vld [vmem:[%s163 + $0x2a0] sm:$0xff]
        %v278 = vld [vmem:[%s163 + $0x2a8] sm:$0xff]
        %v279 = vld [vmem:[%s163 + $0x2b0] sm:$0xff]
        %v280 = vld [vmem:[%s163 + $0x2b8] sm:$0xff]
        %v281 = vld [vmem:[%s163 + $0x2c0] sm:$0xff]
        %v282 = vld [vmem:[%s163 + $0x2c8] sm:$0xff]
        %v283 = vld [vmem:[%s163 + $0x2d0] sm:$0xff]
        %v284 = vld [vmem:[%s163 + $0x2d8] sm:$0xff]
        %v285 = vld [vmem:[%s163 + $0x2e0] sm:$0xff]
        %v286 = vld [vmem:[%s163 + $0x2e8] sm:$0xff]
        %v287 = vld [vmem:[%s163 + $0x2f0] sm:$0xff]
        %v288 = vld [vmem:[%s163 + $0x2f8] sm:$0xff]
        %v289 = vld [vmem:[%s163 + $0x300] sm:$0xff]
        %v290 = vld [vmem:[%s163 + $0x308] sm:$0xff]
        %v291 = vld [vmem:[%s163 + $0x310] sm:$0xff]
        %v292 = vld [vmem:[%s163 + $0x318] sm:$0xff]
        %v293 = vld [vmem:[%s163 + $0x320] sm:$0xff]
        %v294 = vld [vmem:[%s163 + $0x328] sm:$0xff]
        %v295 = vld [vmem:[%s163 + $0x330] sm:$0xff]
        %v296 = vld [vmem:[%s163 + $0x338] sm:$0xff]
        %v297 = vld [vmem:[%s163 + $0x340] sm:$0xff]
        %v298 = vld [vmem:[%s163 + $0x348] sm:$0xff]
        %v299 = vld [vmem:[%s163 + $0x350] sm:$0xff]
        %v300 = vld [vmem:[%s163 + $0x358] sm:$0xff]
        %v301 = vld [vmem:[%s163 + $0x360] sm:$0xff]
        %v302 = vld [vmem:[%s163 + $0x368] sm:$0xff]
        %v303 = vld [vmem:[%s163 + $0x370] sm:$0xff]
        %v304 = vld [vmem:[%s163 + $0x378] sm:$0xff]
        %v305 = vld [vmem:[%s163 + $0x380] sm:$0xff]
        %v306 = vld [vmem:[%s163 + $0x388] sm:$0xff]
        %v307 = vld [vmem:[%s163 + $0x390] sm:$0xff]
        %v308 = vld [vmem:[%s163 + $0x398] sm:$0xff]
        %v309 = vld [vmem:[%s163 + $0x3a0] sm:$0xff]
        %v310 = vld [vmem:[%s163 + $0x3a8] sm:$0xff]
        %v311 = vld [vmem:[%s163 + $0x3b0] sm:$0xff]
        %v312 = vld [vmem:[%s163 + $0x3b8] sm:$0xff]
        %v313 = vld [vmem:[%s163 + $0x3c0] sm:$0xff]
        %v314 = vld [vmem:[%s163 + $0x3c8] sm:$0xff]
        %v315 = vld [vmem:[%s163 + $0x3d0] sm:$0xff]
        %v316 = vld [vmem:[%s163 + $0x3d8] sm:$0xff]
        %v317 = vld [vmem:[%s163 + $0x3e0] sm:$0xff]
        %v318 = vld [vmem:[%s163 + $0x3e8] sm:$0xff]
        %v319 = vld [vmem:[%s163 + $0x3f0] sm:$0xff]
        %v320 = vld [vmem:[%s163 + $0x3f8] sm:$0xff]
        %v321 = vld [vmem:[%s163 + $0x400] sm:$0xff]
        %v322 = vld [vmem:[%s163 + $0x408] sm:$0xff]
        %v323 = vld [vmem:[%s163 + $0x410] sm:$0xff]
        %v324 = vld [vmem:[%s163 + $0x418] sm:$0xff]
        %v325 = vld [vmem:[%s163 + $0x420] sm:$0xff]
        %v326 = vld [vmem:[%s163 + $0x428] sm:$0xff]
        %v327 = vld [vmem:[%s163 + $0x430] sm:$0xff]
        %v328 = vld [vmem:[%s163 + $0x438] sm:$0xff]
        %v329 = vld [vmem:[%s163 + $0x440] sm:$0xff]
        %v330 = vld [vmem:[%s163 + $0x448] sm:$0xff]
        %v331 = vld [vmem:[%s163 + $0x450] sm:$0xff]
        %v332 = vld [vmem:[%s163 + $0x458] sm:$0xff]
        %v333 = vld [vmem:[%s163 + $0x460] sm:$0xff]
        %v334 = vld [vmem:[%s163 + $0x468] sm:$0xff]
        %v335 = vld [vmem:[%s163 + $0x470] sm:$0xff]
        %v336 = vld [vmem:[%s163 + $0x478] sm:$0xff]
        %v337 = vld [vmem:[%s163 + $0x480] sm:$0xff]
        %v338 = vld [vmem:[%s163 + $0x488] sm:$0xff]
        %v339 = vld [vmem:[%s163 + $0x490] sm:$0xff]
        %v340 = vld [vmem:[%s163 + $0x498] sm:$0xff]
        %v341 = vld [vmem:[%s163 + $0x4a0] sm:$0xff]
        %v342 = vld [vmem:[%s163 + $0x4a8] sm:$0xff]
        %v343 = vld [vmem:[%s163 + $0x4b0] sm:$0xff]
        %v344 = vld [vmem:[%s163 + $0x4b8] sm:$0xff]
        %v345 = vld [vmem:[%s163 + $0x4c0] sm:$0xff]
        %v346 = vld [vmem:[%s163 + $0x4c8] sm:$0xff]
        %v347 = vld [vmem:[%s163 + $0x4d0] sm:$0xff]
        %v348 = vld [vmem:[%s163 + $0x4d8] sm:$0xff]
        %v349 = vld [vmem:[%s163 + $0x4e0] sm:$0xff]
        %v350 = vld [vmem:[%s163 + $0x4e8] sm:$0xff]
        %v351 = vld [vmem:[%s163 + $0x4f0] sm:$0xff]
        %v352 = vld [vmem:[%s163 + $0x4f8] sm:$0xff]
        %v353 = vld [vmem:[%s163 + $0x500] sm:$0xff]
        %v354 = vld [vmem:[%s163 + $0x508] sm:$0xff]
        %v355 = vld [vmem:[%s163 + $0x510] sm:$0xff]
        %v356 = vld [vmem:[%s163 + $0x518] sm:$0xff]
        %v357 = vld [vmem:[%s163 + $0x520] sm:$0xff]
        %v358 = vld [vmem:[%s163 + $0x528] sm:$0xff]
        %v359 = vld [vmem:[%s163 + $0x530] sm:$0xff]
        %v360 = vld [vmem:[%s163 + $0x538] sm:$0xff]
        %v361 = vld [vmem:[%s163 + $0x540] sm:$0xff]
        %v362 = vld [vmem:[%s163 + $0x548] sm:$0xff]
        %v363 = vld [vmem:[%s163 + $0x550] sm:$0xff]
        %v364 = vld [vmem:[%s163 + $0x558] sm:$0xff]
        %v365 = vld [vmem:[%s163 + $0x560] sm:$0xff]
        %v366 = vld [vmem:[%s163 + $0x568] sm:$0xff]
        %v367 = vld [vmem:[%s163 + $0x570] sm:$0xff]
        %v368 = vld [vmem:[%s163 + $0x578] sm:$0xff]
        %v369 = vld [vmem:[%s163 + $0x580] sm:$0xff]
        %v370 = vld [vmem:[%s163 + $0x588] sm:$0xff]
        %v371 = vld [vmem:[%s163 + $0x590] sm:$0xff]
        %v372 = vld [vmem:[%s163 + $0x598] sm:$0xff]
        %v373 = vld [vmem:[%s163 + $0x5a0] sm:$0xff]
        %v374 = vld [vmem:[%s163 + $0x5a8] sm:$0xff]
        %v375 = vld [vmem:[%s163 + $0x5b0] sm:$0xff]
        %v376 = vld [vmem:[%s163 + $0x5b8] sm:$0xff]
        %v377 = vld [vmem:[%s163 + $0x5c0] sm:$0xff]
        %v378 = vld [vmem:[%s163 + $0x5c8] sm:$0xff]
        %v379 = vld [vmem:[%s163 + $0x5d0] sm:$0xff]
        %v380 = vld [vmem:[%s163 + $0x5d8] sm:$0xff]
        %v381 = vld [vmem:[%s163 + $0x5e0] sm:$0xff]
        %v382 = vld [vmem:[%s163 + $0x5e8] sm:$0xff]
        %v383 = vld [vmem:[%s163 + $0x5f0] sm:$0xff]
        %v384 = vld [vmem:[%s163 + $0x5f8] sm:$0xff]
        %v385 = vld [vmem:[%s163 + $0x600] sm:$0xff]
        %v386 = vld [vmem:[%s163 + $0x608] sm:$0xff]
        %v387 = vld [vmem:[%s163 + $0x610] sm:$0xff]
        %v388 = vld [vmem:[%s163 + $0x618] sm:$0xff]
        %v389 = vld [vmem:[%s163 + $0x620] sm:$0xff]
        %v390 = vld [vmem:[%s163 + $0x628] sm:$0xff]
        %v391 = vld [vmem:[%s163 + $0x630] sm:$0xff]
        %v392 = vld [vmem:[%s163 + $0x638] sm:$0xff]
        %v393 = vld [vmem:[%s163 + $0x640] sm:$0xff]
        %v394 = vld [vmem:[%s163 + $0x648] sm:$0xff]
        %v395 = vld [vmem:[%s163 + $0x650] sm:$0xff]
        %v396 = vld [vmem:[%s163 + $0x658] sm:$0xff]
        %v397 = vld [vmem:[%s163 + $0x660] sm:$0xff]
        %v398 = vld [vmem:[%s163 + $0x668] sm:$0xff]
        %v399 = vld [vmem:[%s163 + $0x670] sm:$0xff]
        %v400 = vld [vmem:[%s163 + $0x678] sm:$0xff]
        %v401 = vld [vmem:[%s163 + $0x680] sm:$0xff]
        %v402 = vld [vmem:[%s163 + $0x688] sm:$0xff]
        %v403 = vld [vmem:[%s163 + $0x690] sm:$0xff]
        %v404 = vld [vmem:[%s163 + $0x698] sm:$0xff]
        %v405 = vld [vmem:[%s163 + $0x6a0] sm:$0xff]
        %v406 = vld [vmem:[%s163 + $0x6a8] sm:$0xff]
        %v407 = vld [vmem:[%s163 + $0x6b0] sm:$0xff]
        %v408 = vld [vmem:[%s163 + $0x6b8] sm:$0xff]
        %v409 = vld [vmem:[%s163 + $0x6c0] sm:$0xff]
        %v410 = vld [vmem:[%s163 + $0x6c8] sm:$0xff]
        %v411 = vld [vmem:[%s163 + $0x6d0] sm:$0xff]
        %v412 = vld [vmem:[%s163 + $0x6d8] sm:$0xff]
        %v413 = vld [vmem:[%s163 + $0x6e0] sm:$0xff]
        %v414 = vld [vmem:[%s163 + $0x6e8] sm:$0xff]
        %v415 = vld [vmem:[%s163 + $0x6f0] sm:$0xff]
        %v416 = vld [vmem:[%s163 + $0x6f8] sm:$0xff]
        %v417 = vld [vmem:[%s163 + $0x700] sm:$0xff]
        %v418 = vld [vmem:[%s163 + $0x708] sm:$0xff]
        %v419 = vld [vmem:[%s163 + $0x710] sm:$0xff]
        %v420 = vld [vmem:[%s163 + $0x718] sm:$0xff]
        %v421 = vld [vmem:[%s163 + $0x720] sm:$0xff]
        %v422 = vld [vmem:[%s163 + $0x728] sm:$0xff]
        %v423 = vld [vmem:[%s163 + $0x730] sm:$0xff]
        %v424 = vld [vmem:[%s163 + $0x738] sm:$0xff]
        %v425 = vld [vmem:[%s163 + $0x740] sm:$0xff]
        %v426 = vld [vmem:[%s163 + $0x748] sm:$0xff]
        %v427 = vld [vmem:[%s163 + $0x750] sm:$0xff]
        %v428 = vld [vmem:[%s163 + $0x758] sm:$0xff]
        %v429 = vld [vmem:[%s163 + $0x760] sm:$0xff]
        %v430 = vld [vmem:[%s163 + $0x768] sm:$0xff]
        %v431 = vld [vmem:[%s163 + $0x770] sm:$0xff]
        %v432 = vld [vmem:[%s163 + $0x778] sm:$0xff]
        %v433 = vld [vmem:[%s163 + $0x780] sm:$0xff]
        %v434 = vld [vmem:[%s163 + $0x788] sm:$0xff]
        %v435 = vld [vmem:[%s163 + $0x790] sm:$0xff]
        %v436 = vld [vmem:[%s163 + $0x798] sm:$0xff]
        %v437 = vld [vmem:[%s163 + $0x7a0] sm:$0xff]
        %v438 = vld [vmem:[%s163 + $0x7a8] sm:$0xff]
        %v439 = vld [vmem:[%s163 + $0x7b0] sm:$0xff]
        %v440 = vld [vmem:[%s163 + $0x7b8] sm:$0xff]
        %v441 = vld [vmem:[%s163 + $0x7c0] sm:$0xff]
        %v442 = vld [vmem:[%s163 + $0x7c8] sm:$0xff]
        %v443 = vld [vmem:[%s163 + $0x7d0] sm:$0xff]
        %v444 = vld [vmem:[%s163 + $0x7d8] sm:$0xff]
        %v445 = vld [vmem:[%s163 + $0x7e0] sm:$0xff]
        %v446 = vld [vmem:[%s163 + $0x7e8] sm:$0xff]
        %v447 = vld [vmem:[%s163 + $0x7f0] sm:$0xff]
        %v448 = vld [vmem:[%s163 + $0x7f8] sm:$0xff]
        %v705 = vunpack.c.l.b16 %v193
        %v706 = vunpack.c.h.b16 %v193
        %v707 = vunpack.c.l.b16 %v194
        %v708 = vunpack.c.h.b16 %v194
        %v709 = vunpack.c.l.b16 %v195
        %v710 = vunpack.c.h.b16 %v195
        %v711 = vunpack.c.l.b16 %v196
        %v712 = vunpack.c.h.b16 %v196
        %v713 = vunpack.c.l.b16 %v197
        %v714 = vunpack.c.h.b16 %v197
        %v715 = vunpack.c.l.b16 %v198
        %v716 = vunpack.c.h.b16 %v198
        %v717 = vunpack.c.l.b16 %v199
        %v718 = vunpack.c.h.b16 %v199
        %v719 = vunpack.c.l.b16 %v200
        %v720 = vunpack.c.h.b16 %v200
        %v721 = vunpack.c.l.b16 %v201
        %v722 = vunpack.c.h.b16 %v201
        %v723 = vunpack.c.l.b16 %v202
        %v724 = vunpack.c.h.b16 %v202
        %v725 = vunpack.c.l.b16 %v203
        %v726 = vunpack.c.h.b16 %v203
        %v727 = vunpack.c.l.b16 %v204
        %v728 = vunpack.c.h.b16 %v204
        %v729 = vunpack.c.l.b16 %v205
        %v730 = vunpack.c.h.b16 %v205
        %v731 = vunpack.c.l.b16 %v206
        %v732 = vunpack.c.h.b16 %v206
        %v733 = vunpack.c.l.b16 %v207
        %v734 = vunpack.c.h.b16 %v207
        %v735 = vunpack.c.l.b16 %v208
        %v736 = vunpack.c.h.b16 %v208
        %v737 = vunpack.c.l.b16 %v209
        %v738 = vunpack.c.h.b16 %v209
        %v739 = vunpack.c.l.b16 %v210
        %v740 = vunpack.c.h.b16 %v210
        %v741 = vunpack.c.l.b16 %v211
        %v742 = vunpack.c.h.b16 %v211
        %v743 = vunpack.c.l.b16 %v212
        %v744 = vunpack.c.h.b16 %v212
        %v745 = vunpack.c.l.b16 %v213
        %v746 = vunpack.c.h.b16 %v213
        %v747 = vunpack.c.l.b16 %v214
        %v748 = vunpack.c.h.b16 %v214
        %v749 = vunpack.c.l.b16 %v215
        %v750 = vunpack.c.h.b16 %v215
        %v751 = vunpack.c.l.b16 %v216
        %v752 = vunpack.c.h.b16 %v216
        %v753 = vunpack.c.l.b16 %v217
        %v754 = vunpack.c.h.b16 %v217
        %v755 = vunpack.c.l.b16 %v218
        %v756 = vunpack.c.h.b16 %v218
        %v757 = vunpack.c.l.b16 %v219
        %v758 = vunpack.c.h.b16 %v219
        %v759 = vunpack.c.l.b16 %v220
        %v760 = vunpack.c.h.b16 %v220
        %v761 = vunpack.c.l.b16 %v221
        %v762 = vunpack.c.h.b16 %v221
        %v763 = vunpack.c.l.b16 %v222
        %v764 = vunpack.c.h.b16 %v222
        %v765 = vunpack.c.l.b16 %v223
        %v766 = vunpack.c.h.b16 %v223
        %v767 = vunpack.c.l.b16 %v224
        %v768 = vunpack.c.h.b16 %v224
        %v769 = vunpack.c.l.b16 %v225
        %v770 = vunpack.c.h.b16 %v225
        %v771 = vunpack.c.l.b16 %v226
        %v772 = vunpack.c.h.b16 %v226
        %v773 = vunpack.c.l.b16 %v227
        %v774 = vunpack.c.h.b16 %v227
        %v775 = vunpack.c.l.b16 %v228
        %v776 = vunpack.c.h.b16 %v228
        %v777 = vunpack.c.l.b16 %v229
        %v778 = vunpack.c.h.b16 %v229
        %v779 = vunpack.c.l.b16 %v230
        %v780 = vunpack.c.h.b16 %v230
        %v781 = vunpack.c.l.b16 %v231
        %v782 = vunpack.c.h.b16 %v231
        %v783 = vunpack.c.l.b16 %v232
        %v784 = vunpack.c.h.b16 %v232
        %v785 = vunpack.c.l.b16 %v233
        %v786 = vunpack.c.h.b16 %v233
        %v787 = vunpack.c.l.b16 %v234
        %v788 = vunpack.c.h.b16 %v234
        %v789 = vunpack.c.l.b16 %v235
        %v790 = vunpack.c.h.b16 %v235
        %v791 = vunpack.c.l.b16 %v236
        %v792 = vunpack.c.h.b16 %v236
        %v793 = vunpack.c.l.b16 %v237
        %v794 = vunpack.c.h.b16 %v237
        %v795 = vunpack.c.l.b16 %v238
        %v796 = vunpack.c.h.b16 %v238
        %v797 = vunpack.c.l.b16 %v239
        %v798 = vunpack.c.h.b16 %v239
        %v799 = vunpack.c.l.b16 %v240
        %v800 = vunpack.c.h.b16 %v240
        %v801 = vunpack.c.l.b16 %v241
        %v802 = vunpack.c.h.b16 %v241
        %v803 = vunpack.c.l.b16 %v242
        %v804 = vunpack.c.h.b16 %v242
        %v805 = vunpack.c.l.b16 %v243
        %v806 = vunpack.c.h.b16 %v243
        %v807 = vunpack.c.l.b16 %v244
        %v808 = vunpack.c.h.b16 %v244
        %v809 = vunpack.c.l.b16 %v245
        %v810 = vunpack.c.h.b16 %v245
        %v811 = vunpack.c.l.b16 %v246
        %v812 = vunpack.c.h.b16 %v246
        %v813 = vunpack.c.l.b16 %v247
        %v814 = vunpack.c.h.b16 %v247
        %v815 = vunpack.c.l.b16 %v248
        %v816 = vunpack.c.h.b16 %v248
        %v817 = vunpack.c.l.b16 %v249
        %v818 = vunpack.c.h.b16 %v249
        %v819 = vunpack.c.l.b16 %v250
        %v820 = vunpack.c.h.b16 %v250
        %v821 = vunpack.c.l.b16 %v251
        %v822 = vunpack.c.h.b16 %v251
        %v823 = vunpack.c.l.b16 %v252
        %v824 = vunpack.c.h.b16 %v252
        %v825 = vunpack.c.l.b16 %v253
        %v826 = vunpack.c.h.b16 %v253
        %v827 = vunpack.c.l.b16 %v254
        %v828 = vunpack.c.h.b16 %v254
        %v829 = vunpack.c.l.b16 %v255
        %v830 = vunpack.c.h.b16 %v255
        %v831 = vunpack.c.l.b16 %v256
        %v832 = vunpack.c.h.b16 %v256
        %v833 = vunpack.c.l.b16 %v257
        %v834 = vunpack.c.h.b16 %v257
        %v835 = vunpack.c.l.b16 %v258
        %v836 = vunpack.c.h.b16 %v258
        %v837 = vunpack.c.l.b16 %v259
        %v838 = vunpack.c.h.b16 %v259
        %v839 = vunpack.c.l.b16 %v260
        %v840 = vunpack.c.h.b16 %v260
        %v841 = vunpack.c.l.b16 %v261
        %v842 = vunpack.c.h.b16 %v261
        %v843 = vunpack.c.l.b16 %v262
        %v844 = vunpack.c.h.b16 %v262
        %v845 = vunpack.c.l.b16 %v263
        %v846 = vunpack.c.h.b16 %v263
        %v847 = vunpack.c.l.b16 %v264
        %v848 = vunpack.c.h.b16 %v264
        %v849 = vunpack.c.l.b16 %v265
        %v850 = vunpack.c.h.b16 %v265
        %v851 = vunpack.c.l.b16 %v266
        %v852 = vunpack.c.h.b16 %v266
        %v853 = vunpack.c.l.b16 %v267
        %v854 = vunpack.c.h.b16 %v267
        %v855 = vunpack.c.l.b16 %v268
        %v856 = vunpack.c.h.b16 %v268
        %v857 = vunpack.c.l.b16 %v269
        %v858 = vunpack.c.h.b16 %v269
        %v859 = vunpack.c.l.b16 %v270
        %v860 = vunpack.c.h.b16 %v270
        %v861 = vunpack.c.l.b16 %v271
        %v862 = vunpack.c.h.b16 %v271
        %v863 = vunpack.c.l.b16 %v272
        %v864 = vunpack.c.h.b16 %v272
        %v865 = vunpack.c.l.b16 %v273
        %v866 = vunpack.c.h.b16 %v273
        %v867 = vunpack.c.l.b16 %v274
        %v868 = vunpack.c.h.b16 %v274
        %v869 = vunpack.c.l.b16 %v275
        %v870 = vunpack.c.h.b16 %v275
        %v871 = vunpack.c.l.b16 %v276
        %v872 = vunpack.c.h.b16 %v276
        %v873 = vunpack.c.l.b16 %v277
        %v874 = vunpack.c.h.b16 %v277
        %v875 = vunpack.c.l.b16 %v278
        %v876 = vunpack.c.h.b16 %v278
        %v877 = vunpack.c.l.b16 %v279
        %v878 = vunpack.c.h.b16 %v279
        %v879 = vunpack.c.l.b16 %v280
        %v880 = vunpack.c.h.b16 %v280
        %v881 = vunpack.c.l.b16 %v281
        %v882 = vunpack.c.h.b16 %v281
        %v883 = vunpack.c.l.b16 %v282
        %v884 = vunpack.c.h.b16 %v282
        %v885 = vunpack.c.l.b16 %v283
        %v886 = vunpack.c.h.b16 %v283
        %v887 = vunpack.c.l.b16 %v284
        %v888 = vunpack.c.h.b16 %v284
        %v889 = vunpack.c.l.b16 %v285
        %v890 = vunpack.c.h.b16 %v285
        %v891 = vunpack.c.l.b16 %v286
        %v892 = vunpack.c.h.b16 %v286
        %v893 = vunpack.c.l.b16 %v287
        %v894 = vunpack.c.h.b16 %v287
        %v895 = vunpack.c.l.b16 %v288
        %v896 = vunpack.c.h.b16 %v288
        %v897 = vunpack.c.l.b16 %v289
        %v898 = vunpack.c.h.b16 %v289
        %v899 = vunpack.c.l.b16 %v290
        %v900 = vunpack.c.h.b16 %v290
        %v901 = vunpack.c.l.b16 %v291
        %v902 = vunpack.c.h.b16 %v291
        %v903 = vunpack.c.l.b16 %v292
        %v904 = vunpack.c.h.b16 %v292
        %v905 = vunpack.c.l.b16 %v293
        %v906 = vunpack.c.h.b16 %v293
        %v907 = vunpack.c.l.b16 %v294
        %v908 = vunpack.c.h.b16 %v294
        %v909 = vunpack.c.l.b16 %v295
        %v910 = vunpack.c.h.b16 %v295
        %v911 = vunpack.c.l.b16 %v296
        %v912 = vunpack.c.h.b16 %v296
        %v913 = vunpack.c.l.b16 %v297
        %v914 = vunpack.c.h.b16 %v297
        %v915 = vunpack.c.l.b16 %v298
        %v916 = vunpack.c.h.b16 %v298
        %v917 = vunpack.c.l.b16 %v299
        %v918 = vunpack.c.h.b16 %v299
        %v919 = vunpack.c.l.b16 %v300
        %v920 = vunpack.c.h.b16 %v300
        %v921 = vunpack.c.l.b16 %v301
        %v922 = vunpack.c.h.b16 %v301
        %v923 = vunpack.c.l.b16 %v302
        %v924 = vunpack.c.h.b16 %v302
        %v925 = vunpack.c.l.b16 %v303
        %v926 = vunpack.c.h.b16 %v303
        %v927 = vunpack.c.l.b16 %v304
        %v928 = vunpack.c.h.b16 %v304
        %v929 = vunpack.c.l.b16 %v305
        %v930 = vunpack.c.h.b16 %v305
        %v931 = vunpack.c.l.b16 %v306
        %v932 = vunpack.c.h.b16 %v306
        %v933 = vunpack.c.l.b16 %v307
        %v934 = vunpack.c.h.b16 %v307
        %v935 = vunpack.c.l.b16 %v308
        %v936 = vunpack.c.h.b16 %v308
        %v937 = vunpack.c.l.b16 %v309
        %v938 = vunpack.c.h.b16 %v309
        %v939 = vunpack.c.l.b16 %v310
        %v940 = vunpack.c.h.b16 %v310
        %v941 = vunpack.c.l.b16 %v311
        %v942 = vunpack.c.h.b16 %v311
        %v943 = vunpack.c.l.b16 %v312
        %v944 = vunpack.c.h.b16 %v312
        %v945 = vunpack.c.l.b16 %v313
        %v946 = vunpack.c.h.b16 %v313
        %v947 = vunpack.c.l.b16 %v314
        %v948 = vunpack.c.h.b16 %v314
        %v949 = vunpack.c.l.b16 %v315
        %v950 = vunpack.c.h.b16 %v315
        %v951 = vunpack.c.l.b16 %v316
        %v952 = vunpack.c.h.b16 %v316
        %v953 = vunpack.c.l.b16 %v317
        %v954 = vunpack.c.h.b16 %v317
        %v955 = vunpack.c.l.b16 %v318
        %v956 = vunpack.c.h.b16 %v318
        %v957 = vunpack.c.l.b16 %v319
        %v958 = vunpack.c.h.b16 %v319
        %v959 = vunpack.c.l.b16 %v320
        %v960 = vunpack.c.h.b16 %v320
        %v961 = vunpack.c.l.b16 %v321
        %v962 = vunpack.c.h.b16 %v321
        %v963 = vunpack.c.l.b16 %v322
        %v964 = vunpack.c.h.b16 %v322
        %v965 = vunpack.c.l.b16 %v323
        %v966 = vunpack.c.h.b16 %v323
        %v967 = vunpack.c.l.b16 %v324
        %v968 = vunpack.c.h.b16 %v324
        %v969 = vunpack.c.l.b16 %v325
        %v970 = vunpack.c.h.b16 %v325
        %v971 = vunpack.c.l.b16 %v326
        %v972 = vunpack.c.h.b16 %v326
        %v973 = vunpack.c.l.b16 %v327
        %v974 = vunpack.c.h.b16 %v327
        %v975 = vunpack.c.l.b16 %v328
        %v976 = vunpack.c.h.b16 %v328
        %v977 = vunpack.c.l.b16 %v329
        %v978 = vunpack.c.h.b16 %v329
        %v979 = vunpack.c.l.b16 %v330
        %v980 = vunpack.c.h.b16 %v330
        %v981 = vunpack.c.l.b16 %v331
        %v982 = vunpack.c.h.b16 %v331
        %v983 = vunpack.c.l.b16 %v332
        %v984 = vunpack.c.h.b16 %v332
        %v985 = vunpack.c.l.b16 %v333
        %v986 = vunpack.c.h.b16 %v333
        %v987 = vunpack.c.l.b16 %v334
        %v988 = vunpack.c.h.b16 %v334
        %v989 = vunpack.c.l.b16 %v335
        %v990 = vunpack.c.h.b16 %v335
        %v991 = vunpack.c.l.b16 %v336
        %v992 = vunpack.c.h.b16 %v336
        %v993 = vunpack.c.l.b16 %v337
        %v994 = vunpack.c.h.b16 %v337
        %v995 = vunpack.c.l.b16 %v338
        %v996 = vunpack.c.h.b16 %v338
        %v997 = vunpack.c.l.b16 %v339
        %v998 = vunpack.c.h.b16 %v339
        %v999 = vunpack.c.l.b16 %v340
        %v1000 = vunpack.c.h.b16 %v340
        %v1001 = vunpack.c.l.b16 %v341
        %v1002 = vunpack.c.h.b16 %v341
        %v1003 = vunpack.c.l.b16 %v342
        %v1004 = vunpack.c.h.b16 %v342
        %v1005 = vunpack.c.l.b16 %v343
        %v1006 = vunpack.c.h.b16 %v343
        %v1007 = vunpack.c.l.b16 %v344
        %v1008 = vunpack.c.h.b16 %v344
        %v1009 = vunpack.c.l.b16 %v345
        %v1010 = vunpack.c.h.b16 %v345
        %v1011 = vunpack.c.l.b16 %v346
        %v1012 = vunpack.c.h.b16 %v346
        %v1013 = vunpack.c.l.b16 %v347
        %v1014 = vunpack.c.h.b16 %v347
        %v1015 = vunpack.c.l.b16 %v348
        %v1016 = vunpack.c.h.b16 %v348
        %v1017 = vunpack.c.l.b16 %v349
        %v1018 = vunpack.c.h.b16 %v349
        %v1019 = vunpack.c.l.b16 %v350
        %v1020 = vunpack.c.h.b16 %v350
        %v1021 = vunpack.c.l.b16 %v351
        %v1022 = vunpack.c.h.b16 %v351
        %v1023 = vunpack.c.l.b16 %v352
        %v1024 = vunpack.c.h.b16 %v352
        %v1025 = vunpack.c.l.b16 %v353
        %v1026 = vunpack.c.h.b16 %v353
        %v1027 = vunpack.c.l.b16 %v354
        %v1028 = vunpack.c.h.b16 %v354
        %v1029 = vunpack.c.l.b16 %v355
        %v1030 = vunpack.c.h.b16 %v355
        %v1031 = vunpack.c.l.b16 %v356
        %v1032 = vunpack.c.h.b16 %v356
        %v1033 = vunpack.c.l.b16 %v357
        %v1034 = vunpack.c.h.b16 %v357
        %v1035 = vunpack.c.l.b16 %v358
        %v1036 = vunpack.c.h.b16 %v358
        %v1037 = vunpack.c.l.b16 %v359
        %v1038 = vunpack.c.h.b16 %v359
        %v1039 = vunpack.c.l.b16 %v360
        %v1040 = vunpack.c.h.b16 %v360
        %v1041 = vunpack.c.l.b16 %v361
        %v1042 = vunpack.c.h.b16 %v361
        %v1043 = vunpack.c.l.b16 %v362
        %v1044 = vunpack.c.h.b16 %v362
        %v1045 = vunpack.c.l.b16 %v363
        %v1046 = vunpack.c.h.b16 %v363
        %v1047 = vunpack.c.l.b16 %v364
        %v1048 = vunpack.c.h.b16 %v364
        %v1049 = vunpack.c.l.b16 %v365
        %v1050 = vunpack.c.h.b16 %v365
        %v1051 = vunpack.c.l.b16 %v366
        %v1052 = vunpack.c.h.b16 %v366
        %v1053 = vunpack.c.l.b16 %v367
        %v1054 = vunpack.c.h.b16 %v367
        %v1055 = vunpack.c.l.b16 %v368
        %v1056 = vunpack.c.h.b16 %v368
        %v1057 = vunpack.c.l.b16 %v369
        %v1058 = vunpack.c.h.b16 %v369
        %v1059 = vunpack.c.l.b16 %v370
        %v1060 = vunpack.c.h.b16 %v370
        %v1061 = vunpack.c.l.b16 %v371
        %v1062 = vunpack.c.h.b16 %v371
        %v1063 = vunpack.c.l.b16 %v372
        %v1064 = vunpack.c.h.b16 %v372
        %v1065 = vunpack.c.l.b16 %v373
        %v1066 = vunpack.c.h.b16 %v373
        %v1067 = vunpack.c.l.b16 %v374
        %v1068 = vunpack.c.h.b16 %v374
        %v1069 = vunpack.c.l.b16 %v375
        %v1070 = vunpack.c.h.b16 %v375
        %v1071 = vunpack.c.l.b16 %v376
        %v1072 = vunpack.c.h.b16 %v376
        %v1073 = vunpack.c.l.b16 %v377
        %v1074 = vunpack.c.h.b16 %v377
        %v1075 = vunpack.c.l.b16 %v378
        %v1076 = vunpack.c.h.b16 %v378
        %v1077 = vunpack.c.l.b16 %v379
        %v1078 = vunpack.c.h.b16 %v379
        %v1079 = vunpack.c.l.b16 %v380
        %v1080 = vunpack.c.h.b16 %v380
        %v1081 = vunpack.c.l.b16 %v381
        %v1082 = vunpack.c.h.b16 %v381
        %v1083 = vunpack.c.l.b16 %v382
        %v1084 = vunpack.c.h.b16 %v382
        %v1085 = vunpack.c.l.b16 %v383
        %v1086 = vunpack.c.h.b16 %v383
        %v1087 = vunpack.c.l.b16 %v384
        %v1088 = vunpack.c.h.b16 %v384
        %v1089 = vunpack.c.l.b16 %v385
        %v1090 = vunpack.c.h.b16 %v385
        %v1091 = vunpack.c.l.b16 %v386
        %v1092 = vunpack.c.h.b16 %v386
        %v1093 = vunpack.c.l.b16 %v387
        %v1094 = vunpack.c.h.b16 %v387
        %v1095 = vunpack.c.l.b16 %v388
        %v1096 = vunpack.c.h.b16 %v388
        %v1097 = vunpack.c.l.b16 %v389
        %v1098 = vunpack.c.h.b16 %v389
        %v1099 = vunpack.c.l.b16 %v390
        %v1100 = vunpack.c.h.b16 %v390
        %v1101 = vunpack.c.l.b16 %v391
        %v1102 = vunpack.c.h.b16 %v391
        %v1103 = vunpack.c.l.b16 %v392
        %v1104 = vunpack.c.h.b16 %v392
        %v1105 = vunpack.c.l.b16 %v393
        %v1106 = vunpack.c.h.b16 %v393
        %v1107 = vunpack.c.l.b16 %v394
        %v1108 = vunpack.c.h.b16 %v394
        %v1109 = vunpack.c.l.b16 %v395
        %v1110 = vunpack.c.h.b16 %v395
        %v1111 = vunpack.c.l.b16 %v396
        %v1112 = vunpack.c.h.b16 %v396
        %v1113 = vunpack.c.l.b16 %v397
        %v1114 = vunpack.c.h.b16 %v397
        %v1115 = vunpack.c.l.b16 %v398
        %v1116 = vunpack.c.h.b16 %v398
        %v1117 = vunpack.c.l.b16 %v399
        %v1118 = vunpack.c.h.b16 %v399
        %v1119 = vunpack.c.l.b16 %v400
        %v1120 = vunpack.c.h.b16 %v400
        %v1121 = vunpack.c.l.b16 %v401
        %v1122 = vunpack.c.h.b16 %v401
        %v1123 = vunpack.c.l.b16 %v402
        %v1124 = vunpack.c.h.b16 %v402
        %v1125 = vunpack.c.l.b16 %v403
        %v1126 = vunpack.c.h.b16 %v403
        %v1127 = vunpack.c.l.b16 %v404
        %v1128 = vunpack.c.h.b16 %v404
        %v1129 = vunpack.c.l.b16 %v405
        %v1130 = vunpack.c.h.b16 %v405
        %v1131 = vunpack.c.l.b16 %v406
        %v1132 = vunpack.c.h.b16 %v406
        %v1133 = vunpack.c.l.b16 %v407
        %v1134 = vunpack.c.h.b16 %v407
        %v1135 = vunpack.c.l.b16 %v408
        %v1136 = vunpack.c.h.b16 %v408
        %v1137 = vunpack.c.l.b16 %v409
        %v1138 = vunpack.c.h.b16 %v409
        %v1139 = vunpack.c.l.b16 %v410
        %v1140 = vunpack.c.h.b16 %v410
        %v1141 = vunpack.c.l.b16 %v411
        %v1142 = vunpack.c.h.b16 %v411
        %v1143 = vunpack.c.l.b16 %v412
        %v1144 = vunpack.c.h.b16 %v412
        %v1145 = vunpack.c.l.b16 %v413
        %v1146 = vunpack.c.h.b16 %v413
        %v1147 = vunpack.c.l.b16 %v414
        %v1148 = vunpack.c.h.b16 %v414
        %v1149 = vunpack.c.l.b16 %v415
        %v1150 = vunpack.c.h.b16 %v415
        %v1151 = vunpack.c.l.b16 %v416
        %v1152 = vunpack.c.h.b16 %v416
        %v1153 = vunpack.c.l.b16 %v417
        %v1154 = vunpack.c.h.b16 %v417
        %v1155 = vunpack.c.l.b16 %v418
        %v1156 = vunpack.c.h.b16 %v418
        %v1157 = vunpack.c.l.b16 %v419
        %v1158 = vunpack.c.h.b16 %v419
        %v1159 = vunpack.c.l.b16 %v420
        %v1160 = vunpack.c.h.b16 %v420
        %v1161 = vunpack.c.l.b16 %v421
        %v1162 = vunpack.c.h.b16 %v421
        %v1163 = vunpack.c.l.b16 %v422
        %v1164 = vunpack.c.h.b16 %v422
        %v1165 = vunpack.c.l.b16 %v423
        %v1166 = vunpack.c.h.b16 %v423
        %v1167 = vunpack.c.l.b16 %v424
        %v1168 = vunpack.c.h.b16 %v424
        %v1169 = vunpack.c.l.b16 %v425
        %v1170 = vunpack.c.h.b16 %v425
        %v1171 = vunpack.c.l.b16 %v426
        %v1172 = vunpack.c.h.b16 %v426
        %v1173 = vunpack.c.l.b16 %v427
        %v1174 = vunpack.c.h.b16 %v427
        %v1175 = vunpack.c.l.b16 %v428
        %v1176 = vunpack.c.h.b16 %v428
        %v1177 = vunpack.c.l.b16 %v429
        %v1178 = vunpack.c.h.b16 %v429
        %v1179 = vunpack.c.l.b16 %v430
        %v1180 = vunpack.c.h.b16 %v430
        %v1181 = vunpack.c.l.b16 %v431
        %v1182 = vunpack.c.h.b16 %v431
        %v1183 = vunpack.c.l.b16 %v432
        %v1184 = vunpack.c.h.b16 %v432
        %v1185 = vunpack.c.l.b16 %v433
        %v1186 = vunpack.c.h.b16 %v433
        %v1187 = vunpack.c.l.b16 %v434
        %v1188 = vunpack.c.h.b16 %v434
        %v1189 = vunpack.c.l.b16 %v435
        %v1190 = vunpack.c.h.b16 %v435
        %v1191 = vunpack.c.l.b16 %v436
        %v1192 = vunpack.c.h.b16 %v436
        %v1193 = vunpack.c.l.b16 %v437
        %v1194 = vunpack.c.h.b16 %v437
        %v1195 = vunpack.c.l.b16 %v438
        %v1196 = vunpack.c.h.b16 %v438
        %v1197 = vunpack.c.l.b16 %v439
        %v1198 = vunpack.c.h.b16 %v439
        %v1199 = vunpack.c.l.b16 %v440
        %v1200 = vunpack.c.h.b16 %v440
        %v1201 = vunpack.c.l.b16 %v441
        %v1202 = vunpack.c.h.b16 %v441
        %v1203 = vunpack.c.l.b16 %v442
        %v1204 = vunpack.c.h.b16 %v442
        %v1205 = vunpack.c.l.b16 %v443
        %v1206 = vunpack.c.h.b16 %v443
        %v1207 = vunpack.c.l.b16 %v444
        %v1208 = vunpack.c.h.b16 %v444
        %v1209 = vunpack.c.l.b16 %v445
        %v1210 = vunpack.c.h.b16 %v445
        %v1211 = vunpack.c.l.b16 %v446
        %v1212 = vunpack.c.h.b16 %v446
        %v1213 = vunpack.c.l.b16 %v447
        %v1214 = vunpack.c.h.b16 %v447
        %v1215 = vunpack.c.l.b16 %v448
        %v1216 = vunpack.c.h.b16 %v448
        %v1217 = vpack.c.b16 %v737, %v705
        %v1218 = vpack.c.b16 %v738, %v706
        %v1219 = vpack.c.b16 %v739, %v707
        %v1220 = vpack.c.b16 %v740, %v708
        %v1221 = vpack.c.b16 %v741, %v709
        %v1222 = vpack.c.b16 %v742, %v710
        %v1223 = vpack.c.b16 %v743, %v711
        %v1224 = vpack.c.b16 %v744, %v712
        %v1225 = vpack.c.b16 %v745, %v713
        %v1226 = vpack.c.b16 %v746, %v714
        %v1227 = vpack.c.b16 %v747, %v715
        %v1228 = vpack.c.b16 %v748, %v716
        %v1229 = vpack.c.b16 %v749, %v717
        %v1230 = vpack.c.b16 %v750, %v718
        %v1231 = vpack.c.b16 %v751, %v719
        %v1232 = vpack.c.b16 %v752, %v720
        %v1233 = vpack.c.b16 %v753, %v721
        %v1234 = vpack.c.b16 %v754, %v722
        %v1235 = vpack.c.b16 %v755, %v723
        %v1236 = vpack.c.b16 %v756, %v724
        %v1237 = vpack.c.b16 %v757, %v725
        %v1238 = vpack.c.b16 %v758, %v726
        %v1239 = vpack.c.b16 %v759, %v727
        %v1240 = vpack.c.b16 %v760, %v728
        %v1241 = vpack.c.b16 %v761, %v729
        %v1242 = vpack.c.b16 %v762, %v730
        %v1243 = vpack.c.b16 %v763, %v731
        %v1244 = vpack.c.b16 %v764, %v732
        %v1245 = vpack.c.b16 %v765, %v733
        %v1246 = vpack.c.b16 %v766, %v734
        %v1247 = vpack.c.b16 %v767, %v735
        %v1248 = vpack.c.b16 %v768, %v736
        %v1249 = vpack.c.b16 %v801, %v769
        %v1250 = vpack.c.b16 %v802, %v770
        %v1251 = vpack.c.b16 %v803, %v771
        %v1252 = vpack.c.b16 %v804, %v772
        %v1253 = vpack.c.b16 %v805, %v773
        %v1254 = vpack.c.b16 %v806, %v774
        %v1255 = vpack.c.b16 %v807, %v775
        %v1256 = vpack.c.b16 %v808, %v776
        %v1257 = vpack.c.b16 %v809, %v777
        %v1258 = vpack.c.b16 %v810, %v778
        %v1259 = vpack.c.b16 %v811, %v779
        %v1260 = vpack.c.b16 %v812, %v780
        %v1261 = vpack.c.b16 %v813, %v781
        %v1262 = vpack.c.b16 %v814, %v782
        %v1263 = vpack.c.b16 %v815, %v783
        %v1264 = vpack.c.b16 %v816, %v784
        %v1265 = vpack.c.b16 %v817, %v785
        %v1266 = vpack.c.b16 %v818, %v786
        %v1267 = vpack.c.b16 %v819, %v787
        %v1268 = vpack.c.b16 %v820, %v788
        %v1269 = vpack.c.b16 %v821, %v789
        %v1270 = vpack.c.b16 %v822, %v790
        %v1271 = vpack.c.b16 %v823, %v791
        %v1272 = vpack.c.b16 %v824, %v792
        %v1273 = vpack.c.b16 %v825, %v793
        %v1274 = vpack.c.b16 %v826, %v794
        %v1275 = vpack.c.b16 %v827, %v795
        %v1276 = vpack.c.b16 %v828, %v796
        %v1277 = vpack.c.b16 %v829, %v797
        %v1278 = vpack.c.b16 %v830, %v798
        %v1279 = vpack.c.b16 %v831, %v799
        %v1280 = vpack.c.b16 %v832, %v800
        %v1281 = vpack.c.b16 %v865, %v833
        %v1282 = vpack.c.b16 %v866, %v834
        %v1283 = vpack.c.b16 %v867, %v835
        %v1284 = vpack.c.b16 %v868, %v836
        %v1285 = vpack.c.b16 %v869, %v837
        %v1286 = vpack.c.b16 %v870, %v838
        %v1287 = vpack.c.b16 %v871, %v839
        %v1288 = vpack.c.b16 %v872, %v840
        %v1289 = vpack.c.b16 %v873, %v841
        %v1290 = vpack.c.b16 %v874, %v842
        %v1291 = vpack.c.b16 %v875, %v843
        %v1292 = vpack.c.b16 %v876, %v844
        %v1293 = vpack.c.b16 %v877, %v845
        %v1294 = vpack.c.b16 %v878, %v846
        %v1295 = vpack.c.b16 %v879, %v847
        %v1296 = vpack.c.b16 %v880, %v848
        %v1297 = vpack.c.b16 %v881, %v849
        %v1298 = vpack.c.b16 %v882, %v850
        %v1299 = vpack.c.b16 %v883, %v851
        %v1300 = vpack.c.b16 %v884, %v852
        %v1301 = vpack.c.b16 %v885, %v853
        %v1302 = vpack.c.b16 %v886, %v854
        %v1303 = vpack.c.b16 %v887, %v855
        %v1304 = vpack.c.b16 %v888, %v856
        %v1305 = vpack.c.b16 %v889, %v857
        %v1306 = vpack.c.b16 %v890, %v858
        %v1307 = vpack.c.b16 %v891, %v859
        %v1308 = vpack.c.b16 %v892, %v860
        %v1309 = vpack.c.b16 %v893, %v861
        %v1310 = vpack.c.b16 %v894, %v862
        %v1311 = vpack.c.b16 %v895, %v863
        %v1312 = vpack.c.b16 %v896, %v864
        %v1313 = vpack.c.b16 %v929, %v897
        %v1314 = vpack.c.b16 %v930, %v898
        %v1315 = vpack.c.b16 %v931, %v899
        %v1316 = vpack.c.b16 %v932, %v900
        %v1317 = vpack.c.b16 %v933, %v901
        %v1318 = vpack.c.b16 %v934, %v902
        %v1319 = vpack.c.b16 %v935, %v903
        %v1320 = vpack.c.b16 %v936, %v904
        %v1321 = vpack.c.b16 %v937, %v905
        %v1322 = vpack.c.b16 %v938, %v906
        %v1323 = vpack.c.b16 %v939, %v907
        %v1324 = vpack.c.b16 %v940, %v908
        %v1325 = vpack.c.b16 %v941, %v909
        %v1326 = vpack.c.b16 %v942, %v910
        %v1327 = vpack.c.b16 %v943, %v911
        %v1328 = vpack.c.b16 %v944, %v912
        %v1329 = vpack.c.b16 %v945, %v913
        %v1330 = vpack.c.b16 %v946, %v914
        %v1331 = vpack.c.b16 %v947, %v915
        %v1332 = vpack.c.b16 %v948, %v916
        %v1333 = vpack.c.b16 %v949, %v917
        %v1334 = vpack.c.b16 %v950, %v918
        %v1335 = vpack.c.b16 %v951, %v919
        %v1336 = vpack.c.b16 %v952, %v920
        %v1337 = vpack.c.b16 %v953, %v921
        %v1338 = vpack.c.b16 %v954, %v922
        %v1339 = vpack.c.b16 %v955, %v923
        %v1340 = vpack.c.b16 %v956, %v924
        %v1341 = vpack.c.b16 %v957, %v925
        %v1342 = vpack.c.b16 %v958, %v926
        %v1343 = vpack.c.b16 %v959, %v927
        %v1344 = vpack.c.b16 %v960, %v928
        %v1345 = vpack.c.b16 %v993, %v961
        %v1346 = vpack.c.b16 %v994, %v962
        %v1347 = vpack.c.b16 %v995, %v963
        %v1348 = vpack.c.b16 %v996, %v964
        %v1349 = vpack.c.b16 %v997, %v965
        %v1350 = vpack.c.b16 %v998, %v966
        %v1351 = vpack.c.b16 %v999, %v967
        %v1352 = vpack.c.b16 %v1000, %v968
        %v1353 = vpack.c.b16 %v1001, %v969
        %v1354 = vpack.c.b16 %v1002, %v970
        %v1355 = vpack.c.b16 %v1003, %v971
        %v1356 = vpack.c.b16 %v1004, %v972
        %v1357 = vpack.c.b16 %v1005, %v973
        %v1358 = vpack.c.b16 %v1006, %v974
        %v1359 = vpack.c.b16 %v1007, %v975
        %v1360 = vpack.c.b16 %v1008, %v976
        %v1361 = vpack.c.b16 %v1009, %v977
        %v1362 = vpack.c.b16 %v1010, %v978
        %v1363 = vpack.c.b16 %v1011, %v979
        %v1364 = vpack.c.b16 %v1012, %v980
        %v1365 = vpack.c.b16 %v1013, %v981
        %v1366 = vpack.c.b16 %v1014, %v982
        %v1367 = vpack.c.b16 %v1015, %v983
        %v1368 = vpack.c.b16 %v1016, %v984
        %v1369 = vpack.c.b16 %v1017, %v985
        %v1370 = vpack.c.b16 %v1018, %v986
        %v1371 = vpack.c.b16 %v1019, %v987
        %v1372 = vpack.c.b16 %v1020, %v988
        %v1373 = vpack.c.b16 %v1021, %v989
        %v1374 = vpack.c.b16 %v1022, %v990
        %v1375 = vpack.c.b16 %v1023, %v991
        %v1376 = vpack.c.b16 %v1024, %v992
        %v1377 = vpack.c.b16 %v1057, %v1025
        %v1378 = vpack.c.b16 %v1058, %v1026
        %v1379 = vpack.c.b16 %v1059, %v1027
        %v1380 = vpack.c.b16 %v1060, %v1028
        %v1381 = vpack.c.b16 %v1061, %v1029
        %v1382 = vpack.c.b16 %v1062, %v1030
        %v1383 = vpack.c.b16 %v1063, %v1031
        %v1384 = vpack.c.b16 %v1064, %v1032
        %v1385 = vpack.c.b16 %v1065, %v1033
        %v1386 = vpack.c.b16 %v1066, %v1034
        %v1387 = vpack.c.b16 %v1067, %v1035
        %v1388 = vpack.c.b16 %v1068, %v1036
        %v1389 = vpack.c.b16 %v1069, %v1037
        %v1390 = vpack.c.b16 %v1070, %v1038
        %v1391 = vpack.c.b16 %v1071, %v1039
        %v1392 = vpack.c.b16 %v1072, %v1040
        %v1393 = vpack.c.b16 %v1073, %v1041
        %v1394 = vpack.c.b16 %v1074, %v1042
        %v1395 = vpack.c.b16 %v1075, %v1043
        %v1396 = vpack.c.b16 %v1076, %v1044
        %v1397 = vpack.c.b16 %v1077, %v1045
        %v1398 = vpack.c.b16 %v1078, %v1046
        %v1399 = vpack.c.b16 %v1079, %v1047
        %v1400 = vpack.c.b16 %v1080, %v1048
        %v1401 = vpack.c.b16 %v1081, %v1049
        %v1402 = vpack.c.b16 %v1082, %v1050
        %v1403 = vpack.c.b16 %v1083, %v1051
        %v1404 = vpack.c.b16 %v1084, %v1052
        %v1405 = vpack.c.b16 %v1085, %v1053
        %v1406 = vpack.c.b16 %v1086, %v1054
        %v1407 = vpack.c.b16 %v1087, %v1055
        %v1408 = vpack.c.b16 %v1088, %v1056
        %v1409 = vpack.c.b16 %v1121, %v1089
        %v1410 = vpack.c.b16 %v1122, %v1090
        %v1411 = vpack.c.b16 %v1123, %v1091
        %v1412 = vpack.c.b16 %v1124, %v1092
        %v1413 = vpack.c.b16 %v1125, %v1093
        %v1414 = vpack.c.b16 %v1126, %v1094
        %v1415 = vpack.c.b16 %v1127, %v1095
        %v1416 = vpack.c.b16 %v1128, %v1096
        %v1417 = vpack.c.b16 %v1129, %v1097
        %v1418 = vpack.c.b16 %v1130, %v1098
        %v1419 = vpack.c.b16 %v1131, %v1099
        %v1420 = vpack.c.b16 %v1132, %v1100
        %v1421 = vpack.c.b16 %v1133, %v1101
        %v1422 = vpack.c.b16 %v1134, %v1102
        %v1423 = vpack.c.b16 %v1135, %v1103
        %v1424 = vpack.c.b16 %v1136, %v1104
        %v1425 = vpack.c.b16 %v1137, %v1105
        %v1426 = vpack.c.b16 %v1138, %v1106
        %v1427 = vpack.c.b16 %v1139, %v1107
        %v1428 = vpack.c.b16 %v1140, %v1108
        %v1429 = vpack.c.b16 %v1141, %v1109
        %v1430 = vpack.c.b16 %v1142, %v1110
        %v1431 = vpack.c.b16 %v1143, %v1111
        %v1432 = vpack.c.b16 %v1144, %v1112
        %v1433 = vpack.c.b16 %v1145, %v1113
        %v1434 = vpack.c.b16 %v1146, %v1114
        %v1435 = vpack.c.b16 %v1147, %v1115
        %v1436 = vpack.c.b16 %v1148, %v1116
        %v1437 = vpack.c.b16 %v1149, %v1117
        %v1438 = vpack.c.b16 %v1150, %v1118
        %v1439 = vpack.c.b16 %v1151, %v1119
        %v1440 = vpack.c.b16 %v1152, %v1120
        %v1441 = vpack.c.b16 %v1185, %v1153
        %v1442 = vpack.c.b16 %v1186, %v1154
        %v1443 = vpack.c.b16 %v1187, %v1155
        %v1444 = vpack.c.b16 %v1188, %v1156
        %v1445 = vpack.c.b16 %v1189, %v1157
        %v1446 = vpack.c.b16 %v1190, %v1158
        %v1447 = vpack.c.b16 %v1191, %v1159
        %v1448 = vpack.c.b16 %v1192, %v1160
        %v1449 = vpack.c.b16 %v1193, %v1161
        %v1450 = vpack.c.b16 %v1194, %v1162
        %v1451 = vpack.c.b16 %v1195, %v1163
        %v1452 = vpack.c.b16 %v1196, %v1164
        %v1453 = vpack.c.b16 %v1197, %v1165
        %v1454 = vpack.c.b16 %v1198, %v1166
        %v1455 = vpack.c.b16 %v1199, %v1167
        %v1456 = vpack.c.b16 %v1200, %v1168
        %v1457 = vpack.c.b16 %v1201, %v1169
        %v1458 = vpack.c.b16 %v1202, %v1170
        %v1459 = vpack.c.b16 %v1203, %v1171
        %v1460 = vpack.c.b16 %v1204, %v1172
        %v1461 = vpack.c.b16 %v1205, %v1173
        %v1462 = vpack.c.b16 %v1206, %v1174
        %v1463 = vpack.c.b16 %v1207, %v1175
        %v1464 = vpack.c.b16 %v1208, %v1176
        %v1465 = vpack.c.b16 %v1209, %v1177
        %v1466 = vpack.c.b16 %v1210, %v1178
        %v1467 = vpack.c.b16 %v1211, %v1179
        %v1468 = vpack.c.b16 %v1212, %v1180
        %v1469 = vpack.c.b16 %v1213, %v1181
        %v1470 = vpack.c.b16 %v1214, %v1182
        %v1471 = vpack.c.b16 %v1215, %v1183
        %v1472 = vpack.c.b16 %v1216, %v1184
        %1729 = vmatprep.subr.bf16.mxu0 %v1218
        %1730 = vmatpush1.bf16.msra.mxu0 %v1217
        %1731 = vmatprep.subr.bf16.mxu0 %v1250
        %1732 = vmatpush1.bf16.msra.mxu0 %v1249
        %1733 = vmatprep.subr.bf16.mxu0 %v1282
        %1734 = vmatpush1.bf16.msra.mxu0 %v1281
        %1735 = vmatprep.subr.bf16.mxu0 %v1314
        %1736 = vmatpush1.bf16.msra.mxu0 %v1313
        %1737 = vmatprep.subr.bf16.mxu0 %v1346
        %1738 = vmatpush1.bf16.msra.mxu0 %v1345
        %1739 = vmatprep.subr.bf16.mxu0 %v1378
        %1740 = vmatpush1.bf16.msra.mxu0 %v1377
        %1741 = vmatprep.subr.bf16.mxu0 %v1410
        %1742 = vmatpush1.bf16.msra.mxu0 %v1409
        %1743 = vmatprep.subr.bf16.mxu0 %v1442
        %1744 = vmatpush1.bf16.msra.mxu0 %v1441
        %1745 = vmatprep.subr.bf16.mxu0 0
        %1746 = vmatpush1.bf16.msra.mxu0 0
        %1747 = vmatprep.subr.bf16.mxu0 0
        %1748 = vmatpush1.bf16.msra.mxu0 0
        %1749 = vmatprep.subr.bf16.mxu0 0
        %1750 = vmatpush1.bf16.msra.mxu0 0
        %1751 = vmatprep.subr.bf16.mxu0 0
        %1752 = vmatpush1.bf16.msra.mxu0 0
        %1753 = vmatprep.subr.bf16.mxu0 0
        %1754 = vmatpush1.bf16.msra.mxu0 0
        %1755 = vmatprep.subr.bf16.mxu0 0
        %1756 = vmatpush1.bf16.msra.mxu0 0
        %1757 = vmatprep.subr.bf16.mxu0 0
        %1758 = vmatpush1.bf16.msra.mxu0 0
        %1759 = vmatprep.subr.bf16.mxu0 0
        %1760 = vmatpush1.bf16.msra.mxu0 0
        %1761 = vmatprep.mubr.bf16.mxu0 0
        %1762 = vmatmul.mubr.bf16.gmra.mrb[0].mxu0 %v192
        %v1763 = vpop.f32.mrb[0].mxu0
        %v1764 = vadd.f32 0.0, %v1763
        %v1765 = vpop.f32.mrb[0].mxu0
        %v1766 = vadd.f32 0.0, %v1765
        %v1767 = vpop.f32.mrb[0].mxu0
        %v1768 = vpop.f32.mrb[0].mxu0
        %1769 = vdwg.mxu0
        %1770 = vmatprep.subr.bf16.mxu0 %v1220
        %1771 = vmatpush1.bf16.msra.mxu0 %v1219
        %1772 = vmatprep.subr.bf16.mxu0 %v1252
        %1773 = vmatpush1.bf16.msra.mxu0 %v1251
        %1774 = vmatprep.subr.bf16.mxu0 %v1284
        %1775 = vmatpush1.bf16.msra.mxu0 %v1283
        %1776 = vmatprep.subr.bf16.mxu0 %v1316
        %1777 = vmatpush1.bf16.msra.mxu0 %v1315
        %1778 = vmatprep.subr.bf16.mxu0 %v1348
        %1779 = vmatpush1.bf16.msra.mxu0 %v1347
        %1780 = vmatprep.subr.bf16.mxu0 %v1380
        %1781 = vmatpush1.bf16.msra.mxu0 %v1379
        %1782 = vmatprep.subr.bf16.mxu0 %v1412
        %1783 = vmatpush1.bf16.msra.mxu0 %v1411
        %1784 = vmatprep.subr.bf16.mxu0 %v1444
        %1785 = vmatpush1.bf16.msra.mxu0 %v1443
        %1786 = vmatprep.subr.bf16.mxu0 0
        %1787 = vmatpush1.bf16.msra.mxu0 0
        %1788 = vmatprep.subr.bf16.mxu0 0
        %1789 = vmatpush1.bf16.msra.mxu0 0
        %1790 = vmatprep.subr.bf16.mxu0 0
        %1791 = vmatpush1.bf16.msra.mxu0 0
        %1792 = vmatprep.subr.bf16.mxu0 0
        %1793 = vmatpush1.bf16.msra.mxu0 0
        %1794 = vmatprep.subr.bf16.mxu0 0
        %1795 = vmatpush1.bf16.msra.mxu0 0
        %1796 = vmatprep.subr.bf16.mxu0 0
        %1797 = vmatpush1.bf16.msra.mxu0 0
        %1798 = vmatprep.subr.bf16.mxu0 0
        %1799 = vmatpush1.bf16.msra.mxu0 0
        %1800 = vmatprep.subr.bf16.mxu0 0
        %1801 = vmatpush1.bf16.msra.mxu0 0
        %1802 = vmatprep.mubr.bf16.mxu0 0
        %1803 = vmatmul.mubr.bf16.gmra.mrb[0].mxu0 %v192
        %v1804 = vpop.f32.mrb[0].mxu0
        %v1805 = vadd.f32 0.0, %v1804
        %v1806 = vpop.f32.mrb[0].mxu0
        %v1807 = vadd.f32 0.0, %v1806
        %v1808 = vpop.f32.mrb[0].mxu0
        %v1809 = vpop.f32.mrb[0].mxu0
        %1810 = vdwg.mxu0
        %1811 = vmatprep.subr.bf16.mxu0 %v1222
        %1812 = vmatpush1.bf16.msra.mxu0 %v1221
        %1813 = vmatprep.subr.bf16.mxu0 %v1254
        %1814 = vmatpush1.bf16.msra.mxu0 %v1253
        %1815 = vmatprep.subr.bf16.mxu0 %v1286
        %1816 = vmatpush1.bf16.msra.mxu0 %v1285
        %1817 = vmatprep.subr.bf16.mxu0 %v1318
        %1818 = vmatpush1.bf16.msra.mxu0 %v1317
        %1819 = vmatprep.subr.bf16.mxu0 %v1350
        %1820 = vmatpush1.bf16.msra.mxu0 %v1349
        %1821 = vmatprep.subr.bf16.mxu0 %v1382
        %1822 = vmatpush1.bf16.msra.mxu0 %v1381
        %1823 = vmatprep.subr.bf16.mxu0 %v1414
        %1824 = vmatpush1.bf16.msra.mxu0 %v1413
        %1825 = vmatprep.subr.bf16.mxu0 %v1446
        %1826 = vmatpush1.bf16.msra.mxu0 %v1445
        %1827 = vmatprep.subr.bf16.mxu0 0
        %1828 = vmatpush1.bf16.msra.mxu0 0
        %1829 = vmatprep.subr.bf16.mxu0 0
        %1830 = vmatpush1.bf16.msra.mxu0 0
        %1831 = vmatprep.subr.bf16.mxu0 0
        %1832 = vmatpush1.bf16.msra.mxu0 0
        %1833 = vmatprep.subr.bf16.mxu0 0
        %1834 = vmatpush1.bf16.msra.mxu0 0
        %1835 = vmatprep.subr.bf16.mxu0 0
        %1836 = vmatpush1.bf16.msra.mxu0 0
        %1837 = vmatprep.subr.bf16.mxu0 0
        %1838 = vmatpush1.bf16.msra.mxu0 0
        %1839 = vmatprep.subr.bf16.mxu0 0
        %1840 = vmatpush1.bf16.msra.mxu0 0
        %1841 = vmatprep.subr.bf16.mxu0 0
        %1842 = vmatpush1.bf16.msra.mxu0 0
        %1843 = vmatprep.mubr.bf16.mxu0 0
        %1844 = vmatmul.mubr.bf16.gmra.mrb[0].mxu0 %v192
        %v1845 = vpop.f32.mrb[0].mxu0
        %v1846 = vadd.f32 0.0, %v1845
        %v1847 = vpop.f32.mrb[0].mxu0
        %v1848 = vadd.f32 0.0, %v1847
        %v1849 = vpop.f32.mrb[0].mxu0
        %v1850 = vpop.f32.mrb[0].mxu0
        %1851 = vdwg.mxu0
        %1852 = vmatprep.subr.bf16.mxu0 %v1224
        %1853 = vmatpush1.bf16.msra.mxu0 %v1223
        %1854 = vmatprep.subr.bf16.mxu0 %v1256
        %1855 = vmatpush1.bf16.msra.mxu0 %v1255
        %1856 = vmatprep.subr.bf16.mxu0 %v1288
        %1857 = vmatpush1.bf16.msra.mxu0 %v1287
        %1858 = vmatprep.subr.bf16.mxu0 %v1320
        %1859 = vmatpush1.bf16.msra.mxu0 %v1319
        %1860 = vmatprep.subr.bf16.mxu0 %v1352
        %1861 = vmatpush1.bf16.msra.mxu0 %v1351
        %1862 = vmatprep.subr.bf16.mxu0 %v1384
        %1863 = vmatpush1.bf16.msra.mxu0 %v1383
        %1864 = vmatprep.subr.bf16.mxu0 %v1416
        %1865 = vmatpush1.bf16.msra.mxu0 %v1415
        %1866 = vmatprep.subr.bf16.mxu0 %v1448
        %1867 = vmatpush1.bf16.msra.mxu0 %v1447
        %1868 = vmatprep.subr.bf16.mxu0 0
        %1869 = vmatpush1.bf16.msra.mxu0 0
        %1870 = vmatprep.subr.bf16.mxu0 0
        %1871 = vmatpush1.bf16.msra.mxu0 0
        %1872 = vmatprep.subr.bf16.mxu0 0
        %1873 = vmatpush1.bf16.msra.mxu0 0
        %1874 = vmatprep.subr.bf16.mxu0 0
        %1875 = vmatpush1.bf16.msra.mxu0 0
        %1876 = vmatprep.subr.bf16.mxu0 0
        %1877 = vmatpush1.bf16.msra.mxu0 0
        %1878 = vmatprep.subr.bf16.mxu0 0
        %1879 = vmatpush1.bf16.msra.mxu0 0
        %1880 = vmatprep.subr.bf16.mxu0 0
        %1881 = vmatpush1.bf16.msra.mxu0 0
        %1882 = vmatprep.subr.bf16.mxu0 0
        %1883 = vmatpush1.bf16.msra.mxu0 0
        %1884 = vmatprep.mubr.bf16.mxu0 0
        %1885 = vmatmul.mubr.bf16.gmra.mrb[0].mxu0 %v192
        %v1886 = vpop.f32.mrb[0].mxu0
        %v1887 = vadd.f32 0.0, %v1886
        %v1888 = vpop.f32.mrb[0].mxu0
        %v1889 = vadd.f32 0.0, %v1888
        %v1890 = vpop.f32.mrb[0].mxu0
        %v1891 = vpop.f32.mrb[0].mxu0
        %1892 = vdwg.mxu0
        %1893 = vmatprep.subr.bf16.mxu0 %v1226
        %1894 = vmatpush1.bf16.msra.mxu0 %v1225
        %1895 = vmatprep.subr.bf16.mxu0 %v1258
        %1896 = vmatpush1.bf16.msra.mxu0 %v1257
        %1897 = vmatprep.subr.bf16.mxu0 %v1290
        %1898 = vmatpush1.bf16.msra.mxu0 %v1289
        %1899 = vmatprep.subr.bf16.mxu0 %v1322
        %1900 = vmatpush1.bf16.msra.mxu0 %v1321
        %1901 = vmatprep.subr.bf16.mxu0 %v1354
        %1902 = vmatpush1.bf16.msra.mxu0 %v1353
        %1903 = vmatprep.subr.bf16.mxu0 %v1386
        %1904 = vmatpush1.bf16.msra.mxu0 %v1385
        %1905 = vmatprep.subr.bf16.mxu0 %v1418
        %1906 = vmatpush1.bf16.msra.mxu0 %v1417
        %1907 = vmatprep.subr.bf16.mxu0 %v1450
        %1908 = vmatpush1.bf16.msra.mxu0 %v1449
        %1909 = vmatprep.subr.bf16.mxu0 0
        %1910 = vmatpush1.bf16.msra.mxu0 0
        %1911 = vmatprep.subr.bf16.mxu0 0
        %1912 = vmatpush1.bf16.msra.mxu0 0
        %1913 = vmatprep.subr.bf16.mxu0 0
        %1914 = vmatpush1.bf16.msra.mxu0 0
        %1915 = vmatprep.subr.bf16.mxu0 0
        %1916 = vmatpush1.bf16.msra.mxu0 0
        %1917 = vmatprep.subr.bf16.mxu0 0
        %1918 = vmatpush1.bf16.msra.mxu0 0
        %1919 = vmatprep.subr.bf16.mxu0 0
        %1920 = vmatpush1.bf16.msra.mxu0 0
        %1921 = vmatprep.subr.bf16.mxu0 0
        %1922 = vmatpush1.bf16.msra.mxu0 0
        %1923 = vmatprep.subr.bf16.mxu0 0
        %1924 = vmatpush1.bf16.msra.mxu0 0
        %1925 = vmatprep.mubr.bf16.mxu0 0
        %1926 = vmatmul.mubr.bf16.gmra.mrb[0].mxu0 %v192
        %v1927 = vpop.f32.mrb[0].mxu0
        %v1928 = vadd.f32 0.0, %v1927
        %v1929 = vpop.f32.mrb[0].mxu0
        %v1930 = vadd.f32 0.0, %v1929
        %v1931 = vpop.f32.mrb[0].mxu0
        %v1932 = vpop.f32.mrb[0].mxu0
        %1933 = vdwg.mxu0
        %1934 = vmatprep.subr.bf16.mxu0 %v1228
        %1935 = vmatpush1.bf16.msra.mxu0 %v1227
        %1936 = vmatprep.subr.bf16.mxu0 %v1260
        %1937 = vmatpush1.bf16.msra.mxu0 %v1259
        %1938 = vmatprep.subr.bf16.mxu0 %v1292
        %1939 = vmatpush1.bf16.msra.mxu0 %v1291
        %1940 = vmatprep.subr.bf16.mxu0 %v1324
        %1941 = vmatpush1.bf16.msra.mxu0 %v1323
        %1942 = vmatprep.subr.bf16.mxu0 %v1356
        %1943 = vmatpush1.bf16.msra.mxu0 %v1355
        %1944 = vmatprep.subr.bf16.mxu0 %v1388
        %1945 = vmatpush1.bf16.msra.mxu0 %v1387
        %1946 = vmatprep.subr.bf16.mxu0 %v1420
        %1947 = vmatpush1.bf16.msra.mxu0 %v1419
        %1948 = vmatprep.subr.bf16.mxu0 %v1452
        %1949 = vmatpush1.bf16.msra.mxu0 %v1451
        %1950 = vmatprep.subr.bf16.mxu0 0
        %1951 = vmatpush1.bf16.msra.mxu0 0
        %1952 = vmatprep.subr.bf16.mxu0 0
        %1953 = vmatpush1.bf16.msra.mxu0 0
        %1954 = vmatprep.subr.bf16.mxu0 0
        %1955 = vmatpush1.bf16.msra.mxu0 0
        %1956 = vmatprep.subr.bf16.mxu0 0
        %1957 = vmatpush1.bf16.msra.mxu0 0
        %1958 = vmatprep.subr.bf16.mxu0 0
        %1959 = vmatpush1.bf16.msra.mxu0 0
        %1960 = vmatprep.subr.bf16.mxu0 0
        %1961 = vmatpush1.bf16.msra.mxu0 0
        %1962 = vmatprep.subr.bf16.mxu0 0
        %1963 = vmatpush1.bf16.msra.mxu0 0
        %1964 = vmatprep.subr.bf16.mxu0 0
        %1965 = vmatpush1.bf16.msra.mxu0 0
        %1966 = vmatprep.mubr.bf16.mxu0 0
        %1967 = vmatmul.mubr.bf16.gmra.mrb[0].mxu0 %v192
        %v1968 = vpop.f32.mrb[0].mxu0
        %v1969 = vadd.f32 0.0, %v1968
        %v1970 = vpop.f32.mrb[0].mxu0
        %v1971 = vadd.f32 0.0, %v1970
        %v1972 = vpop.f32.mrb[0].mxu0
        %v1973 = vpop.f32.mrb[0].mxu0
        %1974 = vdwg.mxu0
        %1975 = vmatprep.subr.bf16.mxu0 %v1230
        %1976 = vmatpush1.bf16.msra.mxu0 %v1229
        %1977 = vmatprep.subr.bf16.mxu0 %v1262
        %1978 = vmatpush1.bf16.msra.mxu0 %v1261
        %1979 = vmatprep.subr.bf16.mxu0 %v1294
        %1980 = vmatpush1.bf16.msra.mxu0 %v1293
        %1981 = vmatprep.subr.bf16.mxu0 %v1326
        %1982 = vmatpush1.bf16.msra.mxu0 %v1325
        %1983 = vmatprep.subr.bf16.mxu0 %v1358
        %1984 = vmatpush1.bf16.msra.mxu0 %v1357
        %1985 = vmatprep.subr.bf16.mxu0 %v1390
        %1986 = vmatpush1.bf16.msra.mxu0 %v1389
        %1987 = vmatprep.subr.bf16.mxu0 %v1422
        %1988 = vmatpush1.bf16.msra.mxu0 %v1421
        %1989 = vmatprep.subr.bf16.mxu0 %v1454
        %1990 = vmatpush1.bf16.msra.mxu0 %v1453
        %1991 = vmatprep.subr.bf16.mxu0 0
        %1992 = vmatpush1.bf16.msra.mxu0 0
        %1993 = vmatprep.subr.bf16.mxu0 0
        %1994 = vmatpush1.bf16.msra.mxu0 0
        %1995 = vmatprep.subr.bf16.mxu0 0
        %1996 = vmatpush1.bf16.msra.mxu0 0
        %1997 = vmatprep.subr.bf16.mxu0 0
        %1998 = vmatpush1.bf16.msra.mxu0 0
        %1999 = vmatprep.subr.bf16.mxu0 0
        %2000 = vmatpush1.bf16.msra.mxu0 0
        %2001 = vmatprep.subr.bf16.mxu0 0
        %2002 = vmatpush1.bf16.msra.mxu0 0
        %2003 = vmatprep.subr.bf16.mxu0 0
        %2004 = vmatpush1.bf16.msra.mxu0 0
        %2005 = vmatprep.subr.bf16.mxu0 0
        %2006 = vmatpush1.bf16.msra.mxu0 0
        %2007 = vmatprep.mubr.bf16.mxu0 0
        %2008 = vmatmul.mubr.bf16.gmra.mrb[0].mxu0 %v192
        %v2009 = vpop.f32.mrb[0].mxu0
        %v2010 = vadd.f32 0.0, %v2009
        %v2011 = vpop.f32.mrb[0].mxu0
        %v2012 = vadd.f32 0.0, %v2011
        %v2013 = vpop.f32.mrb[0].mxu0
        %v2014 = vpop.f32.mrb[0].mxu0
        %2015 = vdwg.mxu0
        %2016 = vmatprep.subr.bf16.mxu0 %v1232
        %2017 = vmatpush1.bf16.msra.mxu0 %v1231
        %2018 = vmatprep.subr.bf16.mxu0 %v1264
        %2019 = vmatpush1.bf16.msra.mxu0 %v1263
        %2020 = vmatprep.subr.bf16.mxu0 %v1296
        %2021 = vmatpush1.bf16.msra.mxu0 %v1295
        %2022 = vmatprep.subr.bf16.mxu0 %v1328
        %2023 = vmatpush1.bf16.msra.mxu0 %v1327
        %2024 = vmatprep.subr.bf16.mxu0 %v1360
        %2025 = vmatpush1.bf16.msra.mxu0 %v1359
        %2026 = vmatprep.subr.bf16.mxu0 %v1392
        %2027 = vmatpush1.bf16.msra.mxu0 %v1391
        %2028 = vmatprep.subr.bf16.mxu0 %v1424
        %2029 = vmatpush1.bf16.msra.mxu0 %v1423
        %2030 = vmatprep.subr.bf16.mxu0 %v1456
        %2031 = vmatpush1.bf16.msra.mxu0 %v1455
        %2032 = vmatprep.subr.bf16.mxu0 0
        %2033 = vmatpush1.bf16.msra.mxu0 0
        %2034 = vmatprep.subr.bf16.mxu0 0
        %2035 = vmatpush1.bf16.msra.mxu0 0
        %2036 = vmatprep.subr.bf16.mxu0 0
        %2037 = vmatpush1.bf16.msra.mxu0 0
        %2038 = vmatprep.subr.bf16.mxu0 0
        %2039 = vmatpush1.bf16.msra.mxu0 0
        %2040 = vmatprep.subr.bf16.mxu0 0
        %2041 = vmatpush1.bf16.msra.mxu0 0
        %2042 = vmatprep.subr.bf16.mxu0 0
        %2043 = vmatpush1.bf16.msra.mxu0 0
        %2044 = vmatprep.subr.bf16.mxu0 0
        %2045 = vmatpush1.bf16.msra.mxu0 0
        %2046 = vmatprep.subr.bf16.mxu0 0
        %2047 = vmatpush1.bf16.msra.mxu0 0
        %2048 = vmatprep.mubr.bf16.mxu0 0
        %2049 = vmatmul.mubr.bf16.gmra.mrb[0].mxu0 %v192
        %v2050 = vpop.f32.mrb[0].mxu0
        %v2051 = vadd.f32 0.0, %v2050
        %v2052 = vpop.f32.mrb[0].mxu0
        %v2053 = vadd.f32 0.0, %v2052
        %v2054 = vpop.f32.mrb[0].mxu0
        %v2055 = vpop.f32.mrb[0].mxu0
        %2056 = vdwg.mxu0
        %2057 = vmatprep.subr.bf16.mxu0 %v1234
        %2058 = vmatpush1.bf16.msra.mxu0 %v1233
        %2059 = vmatprep.subr.bf16.mxu0 %v1266
        %2060 = vmatpush1.bf16.msra.mxu0 %v1265
        %2061 = vmatprep.subr.bf16.mxu0 %v1298
        %2062 = vmatpush1.bf16.msra.mxu0 %v1297
        %2063 = vmatprep.subr.bf16.mxu0 %v1330
        %2064 = vmatpush1.bf16.msra.mxu0 %v1329
        %2065 = vmatprep.subr.bf16.mxu0 %v1362
        %2066 = vmatpush1.bf16.msra.mxu0 %v1361
        %2067 = vmatprep.subr.bf16.mxu0 %v1394
        %2068 = vmatpush1.bf16.msra.mxu0 %v1393
        %2069 = vmatprep.subr.bf16.mxu0 %v1426
        %2070 = vmatpush1.bf16.msra.mxu0 %v1425
        %2071 = vmatprep.subr.bf16.mxu0 %v1458
        %2072 = vmatpush1.bf16.msra.mxu0 %v1457
        %2073 = vmatprep.subr.bf16.mxu0 0
        %2074 = vmatpush1.bf16.msra.mxu0 0
        %2075 = vmatprep.subr.bf16.mxu0 0
        %2076 = vmatpush1.bf16.msra.mxu0 0
        %2077 = vmatprep.subr.bf16.mxu0 0
        %2078 = vmatpush1.bf16.msra.mxu0 0
        %2079 = vmatprep.subr.bf16.mxu0 0
        %2080 = vmatpush1.bf16.msra.mxu0 0
        %2081 = vmatprep.subr.bf16.mxu0 0
        %2082 = vmatpush1.bf16.msra.mxu0 0
        %2083 = vmatprep.subr.bf16.mxu0 0
        %2084 = vmatpush1.bf16.msra.mxu0 0
        %2085 = vmatprep.subr.bf16.mxu0 0
        %2086 = vmatpush1.bf16.msra.mxu0 0
        %2087 = vmatprep.subr.bf16.mxu0 0
        %2088 = vmatpush1.bf16.msra.mxu0 0
        %2089 = vmatprep.mubr.bf16.mxu0 0
        %2090 = vmatmul.mubr.bf16.gmra.mrb[0].mxu0 %v192
        %v2091 = vpop.f32.mrb[0].mxu0
        %v2092 = vadd.f32 0.0, %v2091
        %v2093 = vpop.f32.mrb[0].mxu0
        %v2094 = vadd.f32 0.0, %v2093
        %v2095 = vpop.f32.mrb[0].mxu0
        %v2096 = vpop.f32.mrb[0].mxu0
        %2097 = vdwg.mxu0
        %2098 = vmatprep.subr.bf16.mxu0 %v1236
        %2099 = vmatpush1.bf16.msra.mxu0 %v1235
        %2100 = vmatprep.subr.bf16.mxu0 %v1268
        %2101 = vmatpush1.bf16.msra.mxu0 %v1267
        %2102 = vmatprep.subr.bf16.mxu0 %v1300
        %2103 = vmatpush1.bf16.msra.mxu0 %v1299
        %2104 = vmatprep.subr.bf16.mxu0 %v1332
        %2105 = vmatpush1.bf16.msra.mxu0 %v1331
        %2106 = vmatprep.subr.bf16.mxu0 %v1364
        %2107 = vmatpush1.bf16.msra.mxu0 %v1363
        %2108 = vmatprep.subr.bf16.mxu0 %v1396
        %2109 = vmatpush1.bf16.msra.mxu0 %v1395
        %2110 = vmatprep.subr.bf16.mxu0 %v1428
        %2111 = vmatpush1.bf16.msra.mxu0 %v1427
        %2112 = vmatprep.subr.bf16.mxu0 %v1460
        %2113 = vmatpush1.bf16.msra.mxu0 %v1459
        %2114 = vmatprep.subr.bf16.mxu0 0
        %2115 = vmatpush1.bf16.msra.mxu0 0
        %2116 = vmatprep.subr.bf16.mxu0 0
        %2117 = vmatpush1.bf16.msra.mxu0 0
        %2118 = vmatprep.subr.bf16.mxu0 0
        %2119 = vmatpush1.bf16.msra.mxu0 0
        %2120 = vmatprep.subr.bf16.mxu0 0
        %2121 = vmatpush1.bf16.msra.mxu0 0
        %2122 = vmatprep.subr.bf16.mxu0 0
        %2123 = vmatpush1.bf16.msra.mxu0 0
        %2124 = vmatprep.subr.bf16.mxu0 0
        %2125 = vmatpush1.bf16.msra.mxu0 0
        %2126 = vmatprep.subr.bf16.mxu0 0
        %2127 = vmatpush1.bf16.msra.mxu0 0
        %2128 = vmatprep.subr.bf16.mxu0 0
        %2129 = vmatpush1.bf16.msra.mxu0 0
        %2130 = vmatprep.mubr.bf16.mxu0 0
        %2131 = vmatmul.mubr.bf16.gmra.mrb[0].mxu0 %v192
        %v2132 = vpop.f32.mrb[0].mxu0
        %v2133 = vadd.f32 0.0, %v2132
        %v2134 = vpop.f32.mrb[0].mxu0
        %v2135 = vadd.f32 0.0, %v2134
        %v2136 = vpop.f32.mrb[0].mxu0
        %v2137 = vpop.f32.mrb[0].mxu0
        %2138 = vdwg.mxu0
        %2139 = vmatprep.subr.bf16.mxu0 %v1238
        %2140 = vmatpush1.bf16.msra.mxu0 %v1237
        %2141 = vmatprep.subr.bf16.mxu0 %v1270
        %2142 = vmatpush1.bf16.msra.mxu0 %v1269
        %2143 = vmatprep.subr.bf16.mxu0 %v1302
        %2144 = vmatpush1.bf16.msra.mxu0 %v1301
        %2145 = vmatprep.subr.bf16.mxu0 %v1334
        %2146 = vmatpush1.bf16.msra.mxu0 %v1333
        %2147 = vmatprep.subr.bf16.mxu0 %v1366
        %2148 = vmatpush1.bf16.msra.mxu0 %v1365
        %2149 = vmatprep.subr.bf16.mxu0 %v1398
        %2150 = vmatpush1.bf16.msra.mxu0 %v1397
        %2151 = vmatprep.subr.bf16.mxu0 %v1430
        %2152 = vmatpush1.bf16.msra.mxu0 %v1429
        %2153 = vmatprep.subr.bf16.mxu0 %v1462
        %2154 = vmatpush1.bf16.msra.mxu0 %v1461
        %2155 = vmatprep.subr.bf16.mxu0 0
        %2156 = vmatpush1.bf16.msra.mxu0 0
        %2157 = vmatprep.subr.bf16.mxu0 0
        %2158 = vmatpush1.bf16.msra.mxu0 0
        %2159 = vmatprep.subr.bf16.mxu0 0
        %2160 = vmatpush1.bf16.msra.mxu0 0
        %2161 = vmatprep.subr.bf16.mxu0 0
        %2162 = vmatpush1.bf16.msra.mxu0 0
        %2163 = vmatprep.subr.bf16.mxu0 0
        %2164 = vmatpush1.bf16.msra.mxu0 0
        %2165 = vmatprep.subr.bf16.mxu0 0
        %2166 = vmatpush1.bf16.msra.mxu0 0
        %2167 = vmatprep.subr.bf16.mxu0 0
        %2168 = vmatpush1.bf16.msra.mxu0 0
        %2169 = vmatprep.subr.bf16.mxu0 0
        %2170 = vmatpush1.bf16.msra.mxu0 0
        %2171 = vmatprep.mubr.bf16.mxu0 0
        %2172 = vmatmul.mubr.bf16.gmra.mrb[0].mxu0 %v192
        %v2173 = vpop.f32.mrb[0].mxu0
        %v2174 = vadd.f32 0.0, %v2173
        %v2175 = vpop.f32.mrb[0].mxu0
        %v2176 = vadd.f32 0.0, %v2175
        %v2177 = vpop.f32.mrb[0].mxu0
        %v2178 = vpop.f32.mrb[0].mxu0
        %2179 = vdwg.mxu0
        %2180 = vmatprep.subr.bf16.mxu0 %v1240
        %2181 = vmatpush1.bf16.msra.mxu0 %v1239
        %2182 = vmatprep.subr.bf16.mxu0 %v1272
        %2183 = vmatpush1.bf16.msra.mxu0 %v1271
        %2184 = vmatprep.subr.bf16.mxu0 %v1304
        %2185 = vmatpush1.bf16.msra.mxu0 %v1303
        %2186 = vmatprep.subr.bf16.mxu0 %v1336
        %2187 = vmatpush1.bf16.msra.mxu0 %v1335
        %2188 = vmatprep.subr.bf16.mxu0 %v1368
        %2189 = vmatpush1.bf16.msra.mxu0 %v1367
        %2190 = vmatprep.subr.bf16.mxu0 %v1400
        %2191 = vmatpush1.bf16.msra.mxu0 %v1399
        %2192 = vmatprep.subr.bf16.mxu0 %v1432
        %2193 = vmatpush1.bf16.msra.mxu0 %v1431
        %2194 = vmatprep.subr.bf16.mxu0 %v1464
        %2195 = vmatpush1.bf16.msra.mxu0 %v1463
        %2196 = vmatprep.subr.bf16.mxu0 0
        %2197 = vmatpush1.bf16.msra.mxu0 0
        %2198 = vmatprep.subr.bf16.mxu0 0
        %2199 = vmatpush1.bf16.msra.mxu0 0
        %2200 = vmatprep.subr.bf16.mxu0 0
        %2201 = vmatpush1.bf16.msra.mxu0 0
        %2202 = vmatprep.subr.bf16.mxu0 0
        %2203 = vmatpush1.bf16.msra.mxu0 0
        %2204 = vmatprep.subr.bf16.mxu0 0
        %2205 = vmatpush1.bf16.msra.mxu0 0
        %2206 = vmatprep.subr.bf16.mxu0 0
        %2207 = vmatpush1.bf16.msra.mxu0 0
        %2208 = vmatprep.subr.bf16.mxu0 0
        %2209 = vmatpush1.bf16.msra.mxu0 0
        %2210 = vmatprep.subr.bf16.mxu0 0
        %2211 = vmatpush1.bf16.msra.mxu0 0
        %2212 = vmatprep.mubr.bf16.mxu0 0
        %2213 = vmatmul.mubr.bf16.gmra.mrb[0].mxu0 %v192
        %v2214 = vpop.f32.mrb[0].mxu0
        %v2215 = vadd.f32 0.0, %v2214
        %v2216 = vpop.f32.mrb[0].mxu0
        %v2217 = vadd.f32 0.0, %v2216
        %v2218 = vpop.f32.mrb[0].mxu0
        %v2219 = vpop.f32.mrb[0].mxu0
        %2220 = vdwg.mxu0
        %2221 = vmatprep.subr.bf16.mxu0 %v1242
        %2222 = vmatpush1.bf16.msra.mxu0 %v1241
        %2223 = vmatprep.subr.bf16.mxu0 %v1274
        %2224 = vmatpush1.bf16.msra.mxu0 %v1273
        %2225 = vmatprep.subr.bf16.mxu0 %v1306
        %2226 = vmatpush1.bf16.msra.mxu0 %v1305
        %2227 = vmatprep.subr.bf16.mxu0 %v1338
        %2228 = vmatpush1.bf16.msra.mxu0 %v1337
        %2229 = vmatprep.subr.bf16.mxu0 %v1370
        %2230 = vmatpush1.bf16.msra.mxu0 %v1369
        %2231 = vmatprep.subr.bf16.mxu0 %v1402
        %2232 = vmatpush1.bf16.msra.mxu0 %v1401
        %2233 = vmatprep.subr.bf16.mxu0 %v1434
        %2234 = vmatpush1.bf16.msra.mxu0 %v1433
        %2235 = vmatprep.subr.bf16.mxu0 %v1466
        %2236 = vmatpush1.bf16.msra.mxu0 %v1465
        %2237 = vmatprep.subr.bf16.mxu0 0
        %2238 = vmatpush1.bf16.msra.mxu0 0
        %2239 = vmatprep.subr.bf16.mxu0 0
        %2240 = vmatpush1.bf16.msra.mxu0 0
        %2241 = vmatprep.subr.bf16.mxu0 0
        %2242 = vmatpush1.bf16.msra.mxu0 0
        %2243 = vmatprep.subr.bf16.mxu0 0
        %2244 = vmatpush1.bf16.msra.mxu0 0
        %2245 = vmatprep.subr.bf16.mxu0 0
        %2246 = vmatpush1.bf16.msra.mxu0 0
        %2247 = vmatprep.subr.bf16.mxu0 0
        %2248 = vmatpush1.bf16.msra.mxu0 0
        %2249 = vmatprep.subr.bf16.mxu0 0
        %2250 = vmatpush1.bf16.msra.mxu0 0
        %2251 = vmatprep.subr.bf16.mxu0 0
        %2252 = vmatpush1.bf16.msra.mxu0 0
        %2253 = vmatprep.mubr.bf16.mxu0 0
        %2254 = vmatmul.mubr.bf16.gmra.mrb[0].mxu0 %v192
        %v2255 = vpop.f32.mrb[0].mxu0
        %v2256 = vadd.f32 0.0, %v2255
        %v2257 = vpop.f32.mrb[0].mxu0
        %v2258 = vadd.f32 0.0, %v2257
        %v2259 = vpop.f32.mrb[0].mxu0
        %v2260 = vpop.f32.mrb[0].mxu0
        %2261 = vdwg.mxu0
        %2262 = vmatprep.subr.bf16.mxu0 %v1244
        %2263 = vmatpush1.bf16.msra.mxu0 %v1243
        %2264 = vmatprep.subr.bf16.mxu0 %v1276
        %2265 = vmatpush1.bf16.msra.mxu0 %v1275
        %2266 = vmatprep.subr.bf16.mxu0 %v1308
        %2267 = vmatpush1.bf16.msra.mxu0 %v1307
        %2268 = vmatprep.subr.bf16.mxu0 %v1340
        %2269 = vmatpush1.bf16.msra.mxu0 %v1339
        %2270 = vmatprep.subr.bf16.mxu0 %v1372
        %2271 = vmatpush1.bf16.msra.mxu0 %v1371
        %2272 = vmatprep.subr.bf16.mxu0 %v1404
        %2273 = vmatpush1.bf16.msra.mxu0 %v1403
        %2274 = vmatprep.subr.bf16.mxu0 %v1436
        %2275 = vmatpush1.bf16.msra.mxu0 %v1435
        %2276 = vmatprep.subr.bf16.mxu0 %v1468
        %2277 = vmatpush1.bf16.msra.mxu0 %v1467
        %2278 = vmatprep.subr.bf16.mxu0 0
        %2279 = vmatpush1.bf16.msra.mxu0 0
        %2280 = vmatprep.subr.bf16.mxu0 0
        %2281 = vmatpush1.bf16.msra.mxu0 0
        %2282 = vmatprep.subr.bf16.mxu0 0
        %2283 = vmatpush1.bf16.msra.mxu0 0
        %2284 = vmatprep.subr.bf16.mxu0 0
        %2285 = vmatpush1.bf16.msra.mxu0 0
        %2286 = vmatprep.subr.bf16.mxu0 0
        %2287 = vmatpush1.bf16.msra.mxu0 0
        %2288 = vmatprep.subr.bf16.mxu0 0
        %2289 = vmatpush1.bf16.msra.mxu0 0
        %2290 = vmatprep.subr.bf16.mxu0 0
        %2291 = vmatpush1.bf16.msra.mxu0 0
        %2292 = vmatprep.subr.bf16.mxu0 0
        %2293 = vmatpush1.bf16.msra.mxu0 0
        %2294 = vmatprep.mubr.bf16.mxu0 0
        %2295 = vmatmul.mubr.bf16.gmra.mrb[0].mxu0 %v192
        %v2296 = vpop.f32.mrb[0].mxu0
        %v2297 = vadd.f32 0.0, %v2296
        %v2298 = vpop.f32.mrb[0].mxu0
        %v2299 = vadd.f32 0.0, %v2298
        %v2300 = vpop.f32.mrb[0].mxu0
        %v2301 = vpop.f32.mrb[0].mxu0
        %2302 = vdwg.mxu0
        %2303 = vmatprep.subr.bf16.mxu0 %v1246
        %2304 = vmatpush1.bf16.msra.mxu0 %v1245
        %2305 = vmatprep.subr.bf16.mxu0 %v1278
        %2306 = vmatpush1.bf16.msra.mxu0 %v1277
        %2307 = vmatprep.subr.bf16.mxu0 %v1310
        %2308 = vmatpush1.bf16.msra.mxu0 %v1309
        %2309 = vmatprep.subr.bf16.mxu0 %v1342
        %2310 = vmatpush1.bf16.msra.mxu0 %v1341
        %2311 = vmatprep.subr.bf16.mxu0 %v1374
        %2312 = vmatpush1.bf16.msra.mxu0 %v1373
        %2313 = vmatprep.subr.bf16.mxu0 %v1406
        %2314 = vmatpush1.bf16.msra.mxu0 %v1405
        %2315 = vmatprep.subr.bf16.mxu0 %v1438
        %2316 = vmatpush1.bf16.msra.mxu0 %v1437
        %2317 = vmatprep.subr.bf16.mxu0 %v1470
        %2318 = vmatpush1.bf16.msra.mxu0 %v1469
        %2319 = vmatprep.subr.bf16.mxu0 0
        %2320 = vmatpush1.bf16.msra.mxu0 0
        %2321 = vmatprep.subr.bf16.mxu0 0
        %2322 = vmatpush1.bf16.msra.mxu0 0
        %2323 = vmatprep.subr.bf16.mxu0 0
        %2324 = vmatpush1.bf16.msra.mxu0 0
        %2325 = vmatprep.subr.bf16.mxu0 0
        %2326 = vmatpush1.bf16.msra.mxu0 0
        %2327 = vmatprep.subr.bf16.mxu0 0
        %2328 = vmatpush1.bf16.msra.mxu0 0
        %2329 = vmatprep.subr.bf16.mxu0 0
        %2330 = vmatpush1.bf16.msra.mxu0 0
        %2331 = vmatprep.subr.bf16.mxu0 0
        %2332 = vmatpush1.bf16.msra.mxu0 0
        %2333 = vmatprep.subr.bf16.mxu0 0
        %2334 = vmatpush1.bf16.msra.mxu0 0
        %2335 = vmatprep.mubr.bf16.mxu0 0
        %2336 = vmatmul.mubr.bf16.gmra.mrb[0].mxu0 %v192
        %v2337 = vpop.f32.mrb[0].mxu0
        %v2338 = vadd.f32 0.0, %v2337
        %v2339 = vpop.f32.mrb[0].mxu0
        %v2340 = vadd.f32 0.0, %v2339
        %v2341 = vpop.f32.mrb[0].mxu0
        %v2342 = vpop.f32.mrb[0].mxu0
        %2343 = vdwg.mxu0
        %2344 = vmatprep.subr.bf16.mxu0 %v1248
        %2345 = vmatpush1.bf16.msra.mxu0 %v1247
        %2346 = vmatprep.subr.bf16.mxu0 %v1280
        %2347 = vmatpush1.bf16.msra.mxu0 %v1279
        %2348 = vmatprep.subr.bf16.mxu0 %v1312
        %2349 = vmatpush1.bf16.msra.mxu0 %v1311
        %2350 = vmatprep.subr.bf16.mxu0 %v1344
        %2351 = vmatpush1.bf16.msra.mxu0 %v1343
        %2352 = vmatprep.subr.bf16.mxu0 %v1376
        %2353 = vmatpush1.bf16.msra.mxu0 %v1375
        %2354 = vmatprep.subr.bf16.mxu0 %v1408
        %2355 = vmatpush1.bf16.msra.mxu0 %v1407
        %2356 = vmatprep.subr.bf16.mxu0 %v1440
        %2357 = vmatpush1.bf16.msra.mxu0 %v1439
        %2358 = vmatprep.subr.bf16.mxu0 %v1472
        %2359 = vmatpush1.bf16.msra.mxu0 %v1471
        %2360 = vmatprep.subr.bf16.mxu0 0
        %2361 = vmatpush1.bf16.msra.mxu0 0
        %2362 = vmatprep.subr.bf16.mxu0 0
        %2363 = vmatpush1.bf16.msra.mxu0 0
        %2364 = vmatprep.subr.bf16.mxu0 0
        %2365 = vmatpush1.bf16.msra.mxu0 0
        %2366 = vmatprep.subr.bf16.mxu0 0
        %2367 = vmatpush1.bf16.msra.mxu0 0
        %2368 = vmatprep.subr.bf16.mxu0 0
        %2369 = vmatpush1.bf16.msra.mxu0 0
        %2370 = vmatprep.subr.bf16.mxu0 0
        %2371 = vmatpush1.bf16.msra.mxu0 0
        %2372 = vmatprep.subr.bf16.mxu0 0
        %2373 = vmatpush1.bf16.msra.mxu0 0
        %2374 = vmatprep.subr.bf16.mxu0 0
        %2375 = vmatpush1.bf16.msra.mxu0 0
        %2376 = vmatprep.mubr.bf16.mxu0 0
        %2377 = vmatmul.mubr.bf16.gmra.mrb[0].mxu0 %v192
        %v2378 = vpop.f32.mrb[0].mxu0
        %v2379 = vadd.f32 0.0, %v2378
        %v2380 = vpop.f32.mrb[0].mxu0
        %v2381 = vadd.f32 0.0, %v2380
        %v2382 = vpop.f32.mrb[0].mxu0
        %v2383 = vpop.f32.mrb[0].mxu0
        %2384 = vdwg.mxu0
        %2386 = vrot.lane.b32.xlu0 %v1764, 64
        %v2387 = vpop.permute.xlu0 %2386
        %2390 = vrot.lane.b32.xlu0 %v1766, 64
        %v2391 = vpop.permute.xlu0 %2390
        %2394 = vrot.lane.b32.xlu0 %v1805, 64
        %v2395 = vpop.permute.xlu0 %2394
        %2398 = vrot.lane.b32.xlu0 %v1807, 64
        %v2399 = vpop.permute.xlu0 %2398
        %2402 = vrot.lane.b32.xlu0 %v1846, 64
        %v2403 = vpop.permute.xlu0 %2402
        %2406 = vrot.lane.b32.xlu0 %v1848, 64
        %v2407 = vpop.permute.xlu0 %2406
        %2410 = vrot.lane.b32.xlu0 %v1887, 64
        %v2411 = vpop.permute.xlu0 %2410
        %2414 = vrot.lane.b32.xlu0 %v1889, 64
        %v2415 = vpop.permute.xlu0 %2414
        %2418 = vrot.lane.b32.xlu0 %v1928, 64
        %v2419 = vpop.permute.xlu0 %2418
        %2422 = vrot.lane.b32.xlu0 %v1930, 64
        %v2423 = vpop.permute.xlu0 %2422
        %2426 = vrot.lane.b32.xlu0 %v1969, 64
        %v2427 = vpop.permute.xlu0 %2426
        %2430 = vrot.lane.b32.xlu0 %v1971, 64
        %v2431 = vpop.permute.xlu0 %2430
        %2434 = vrot.lane.b32.xlu0 %v2010, 64
        %v2435 = vpop.permute.xlu0 %2434
        %2438 = vrot.lane.b32.xlu0 %v2012, 64
        %v2439 = vpop.permute.xlu0 %2438
        %2442 = vrot.lane.b32.xlu0 %v2051, 64
        %v2443 = vpop.permute.xlu0 %2442
        %2446 = vrot.lane.b32.xlu0 %v2053, 64
        %v2447 = vpop.permute.xlu0 %2446
        %2450 = vrot.lane.b32.xlu0 %v2092, 64
        %v2451 = vpop.permute.xlu0 %2450
        %2454 = vrot.lane.b32.xlu0 %v2094, 64
        %v2455 = vpop.permute.xlu0 %2454
        %2458 = vrot.lane.b32.xlu0 %v2133, 64
        %v2459 = vpop.permute.xlu0 %2458
        %2462 = vrot.lane.b32.xlu0 %v2135, 64
        %v2463 = vpop.permute.xlu0 %2462
        %2466 = vrot.lane.b32.xlu0 %v2174, 64
        %v2467 = vpop.permute.xlu0 %2466
        %2470 = vrot.lane.b32.xlu0 %v2176, 64
        %v2471 = vpop.permute.xlu0 %2470
        %2474 = vrot.lane.b32.xlu0 %v2215, 64
        %v2475 = vpop.permute.xlu0 %2474
        %2478 = vrot.lane.b32.xlu0 %v2217, 64
        %v2479 = vpop.permute.xlu0 %2478
        %2482 = vrot.lane.b32.xlu0 %v2256, 64
        %v2483 = vpop.permute.xlu0 %2482
        %2486 = vrot.lane.b32.xlu0 %v2258, 64
        %v2487 = vpop.permute.xlu0 %2486
        %2490 = vrot.lane.b32.xlu0 %v2297, 64
        %v2491 = vpop.permute.xlu0 %2490
        %2494 = vrot.lane.b32.xlu0 %v2299, 64
        %v2495 = vpop.permute.xlu0 %2494
        %2498 = vrot.lane.b32.xlu0 %v2338, 64
        %v2499 = vpop.permute.xlu0 %2498
        %2502 = vrot.lane.b32.xlu0 %v2340, 64
        %v2503 = vpop.permute.xlu0 %2502
        %2506 = vrot.lane.b32.xlu0 %v2379, 64
        %v2507 = vpop.permute.xlu0 %2506
        %2510 = vrot.lane.b32.xlu0 %v2381, 64
        %v2511 = vpop.permute.xlu0 %2510
        %v2513 = vcombine.low %v1764, %v1766
        %v2515 = vunpack.c.l.s4 1983009808
        %v2516 = vunpack.c.0.s8 %v2515
        %v2517 = vlaneseq
        %v2518 = vshrl.u32 %v2517, 7
        %v2519 = vsub.s32 %v2516, %v2518
        %v2520 = vrot.slane %v2513, %v2519
        %v2521 = vcombine.low %v2387, %v2391
        %v2523 = vunpack.c.l.s4 1983009808
        %v2524 = vunpack.c.0.s8 %v2523
        %v2525 = vlaneseq
        %v2526 = vshrl.u32 %v2525, 7
        %v2527 = vsub.s32 %v2524, %v2526
        %v2528 = vrot.slane %v2521, %v2527
        %v2529 = vcombine.low %v1805, %v1807
        %v2531 = vunpack.c.l.s4 1983009808
        %v2532 = vunpack.c.0.s8 %v2531
        %v2533 = vlaneseq
        %v2534 = vshrl.u32 %v2533, 7
        %v2535 = vsub.s32 %v2532, %v2534
        %v2536 = vrot.slane %v2529, %v2535
        %v2537 = vcombine.low %v2395, %v2399
        %v2539 = vunpack.c.l.s4 1983009808
        %v2540 = vunpack.c.0.s8 %v2539
        %v2541 = vlaneseq
        %v2542 = vshrl.u32 %v2541, 7
        %v2543 = vsub.s32 %v2540, %v2542
        %v2544 = vrot.slane %v2537, %v2543
        %v2545 = vcombine.low %v2520, %v2528
        %v2546 = vcombine.high %v2520, %v2528
        %v2548 = vunpack.c.l.s4 1934713408
        %v2549 = vunpack.c.0.s8 %v2548
        %v2550 = vlaneseq
        %v2551 = vshrl.u32 %v2550, 7
        %v2552 = vsub.s32 %v2549, %v2551
        %v2553 = vrot.slane %v2545, %v2552
        %v2555 = vunpack.c.l.s4 1934713408
        %v2556 = vunpack.c.0.s8 %v2555
        %v2557 = vlaneseq
        %v2558 = vshrl.u32 %v2557, 7
        %v2559 = vsub.s32 %v2556, %v2558
        %v2560 = vrot.slane %v2546, %v2559
        %v2561 = vcombine.low %v2536, %v2544
        %v2562 = vcombine.high %v2536, %v2544
        %v2564 = vunpack.c.l.s4 1934713408
        %v2565 = vunpack.c.0.s8 %v2564
        %v2566 = vlaneseq
        %v2567 = vshrl.u32 %v2566, 7
        %v2568 = vsub.s32 %v2565, %v2567
        %v2569 = vrot.slane %v2561, %v2568
        %v2571 = vunpack.c.l.s4 1934713408
        %v2572 = vunpack.c.0.s8 %v2571
        %v2573 = vlaneseq
        %v2574 = vshrl.u32 %v2573, 7
        %v2575 = vsub.s32 %v2572, %v2574
        %v2576 = vrot.slane %v2562, %v2575
        %v2577 = vcombine.low %v2553, %v2569
        %v2578 = vcombine.high %v2553, %v2569
        %v2579 = vcombine.low %v2560, %v2576
        %v2580 = vcombine.high %v2560, %v2576
        %v2581 = vcombine.low %v1846, %v1848
        %v2583 = vunpack.c.l.s4 1983009808
        %v2584 = vunpack.c.0.s8 %v2583
        %v2585 = vlaneseq
        %v2586 = vshrl.u32 %v2585, 7
        %v2587 = vsub.s32 %v2584, %v2586
        %v2588 = vrot.slane %v2581, %v2587
        %v2589 = vcombine.low %v2403, %v2407
        %v2591 = vunpack.c.l.s4 1983009808
        %v2592 = vunpack.c.0.s8 %v2591
        %v2593 = vlaneseq
        %v2594 = vshrl.u32 %v2593, 7
        %v2595 = vsub.s32 %v2592, %v2594
        %v2596 = vrot.slane %v2589, %v2595
        %v2597 = vcombine.low %v1887, %v1889
        %v2599 = vunpack.c.l.s4 1983009808
        %v2600 = vunpack.c.0.s8 %v2599
        %v2601 = vlaneseq
        %v2602 = vshrl.u32 %v2601, 7
        %v2603 = vsub.s32 %v2600, %v2602
        %v2604 = vrot.slane %v2597, %v2603
        %v2605 = vcombine.low %v2411, %v2415
        %v2607 = vunpack.c.l.s4 1983009808
        %v2608 = vunpack.c.0.s8 %v2607
        %v2609 = vlaneseq
        %v2610 = vshrl.u32 %v2609, 7
        %v2611 = vsub.s32 %v2608, %v2610
        %v2612 = vrot.slane %v2605, %v2611
        %v2613 = vcombine.low %v2588, %v2596
        %v2614 = vcombine.high %v2588, %v2596
        %v2616 = vunpack.c.l.s4 1934713408
        %v2617 = vunpack.c.0.s8 %v2616
        %v2618 = vlaneseq
        %v2619 = vshrl.u32 %v2618, 7
        %v2620 = vsub.s32 %v2617, %v2619
        %v2621 = vrot.slane %v2613, %v2620
        %v2623 = vunpack.c.l.s4 1934713408
        %v2624 = vunpack.c.0.s8 %v2623
        %v2625 = vlaneseq
        %v2626 = vshrl.u32 %v2625, 7
        %v2627 = vsub.s32 %v2624, %v2626
        %v2628 = vrot.slane %v2614, %v2627
        %v2629 = vcombine.low %v2604, %v2612
        %v2630 = vcombine.high %v2604, %v2612
        %v2632 = vunpack.c.l.s4 1934713408
        %v2633 = vunpack.c.0.s8 %v2632
        %v2634 = vlaneseq
        %v2635 = vshrl.u32 %v2634, 7
        %v2636 = vsub.s32 %v2633, %v2635
        %v2637 = vrot.slane %v2629, %v2636
        %v2639 = vunpack.c.l.s4 1934713408
        %v2640 = vunpack.c.0.s8 %v2639
        %v2641 = vlaneseq
        %v2642 = vshrl.u32 %v2641, 7
        %v2643 = vsub.s32 %v2640, %v2642
        %v2644 = vrot.slane %v2630, %v2643
        %v2645 = vcombine.low %v2621, %v2637
        %v2646 = vcombine.high %v2621, %v2637
        %v2647 = vcombine.low %v2628, %v2644
        %v2648 = vcombine.high %v2628, %v2644
        %v2649 = vcombine.low %v1928, %v1930
        %v2651 = vunpack.c.l.s4 1983009808
        %v2652 = vunpack.c.0.s8 %v2651
        %v2653 = vlaneseq
        %v2654 = vshrl.u32 %v2653, 7
        %v2655 = vsub.s32 %v2652, %v2654
        %v2656 = vrot.slane %v2649, %v2655
        %v2657 = vcombine.low %v2419, %v2423
        %v2659 = vunpack.c.l.s4 1983009808
        %v2660 = vunpack.c.0.s8 %v2659
        %v2661 = vlaneseq
        %v2662 = vshrl.u32 %v2661, 7
        %v2663 = vsub.s32 %v2660, %v2662
        %v2664 = vrot.slane %v2657, %v2663
        %v2665 = vcombine.low %v1969, %v1971
        %v2667 = vunpack.c.l.s4 1983009808
        %v2668 = vunpack.c.0.s8 %v2667
        %v2669 = vlaneseq
        %v2670 = vshrl.u32 %v2669, 7
        %v2671 = vsub.s32 %v2668, %v2670
        %v2672 = vrot.slane %v2665, %v2671
        %v2673 = vcombine.low %v2427, %v2431
        %v2675 = vunpack.c.l.s4 1983009808
        %v2676 = vunpack.c.0.s8 %v2675
        %v2677 = vlaneseq
        %v2678 = vshrl.u32 %v2677, 7
        %v2679 = vsub.s32 %v2676, %v2678
        %v2680 = vrot.slane %v2673, %v2679
        %v2681 = vcombine.low %v2656, %v2664
        %v2682 = vcombine.high %v2656, %v2664
        %v2684 = vunpack.c.l.s4 1934713408
        %v2685 = vunpack.c.0.s8 %v2684
        %v2686 = vlaneseq
        %v2687 = vshrl.u32 %v2686, 7
        %v2688 = vsub.s32 %v2685, %v2687
        %v2689 = vrot.slane %v2681, %v2688
        %v2691 = vunpack.c.l.s4 1934713408
        %v2692 = vunpack.c.0.s8 %v2691
        %v2693 = vlaneseq
        %v2694 = vshrl.u32 %v2693, 7
        %v2695 = vsub.s32 %v2692, %v2694
        %v2696 = vrot.slane %v2682, %v2695
        %v2697 = vcombine.low %v2672, %v2680
        %v2698 = vcombine.high %v2672, %v2680
        %v2700 = vunpack.c.l.s4 1934713408
        %v2701 = vunpack.c.0.s8 %v2700
        %v2702 = vlaneseq
        %v2703 = vshrl.u32 %v2702, 7
        %v2704 = vsub.s32 %v2701, %v2703
        %v2705 = vrot.slane %v2697, %v2704
        %v2707 = vunpack.c.l.s4 1934713408
        %v2708 = vunpack.c.0.s8 %v2707
        %v2709 = vlaneseq
        %v2710 = vshrl.u32 %v2709, 7
        %v2711 = vsub.s32 %v2708, %v2710
        %v2712 = vrot.slane %v2698, %v2711
        %v2713 = vcombine.low %v2689, %v2705
        %v2714 = vcombine.high %v2689, %v2705
        %v2715 = vcombine.low %v2696, %v2712
        %v2716 = vcombine.high %v2696, %v2712
        %v2717 = vcombine.low %v2010, %v2012
        %v2719 = vunpack.c.l.s4 1983009808
        %v2720 = vunpack.c.0.s8 %v2719
        %v2721 = vlaneseq
        %v2722 = vshrl.u32 %v2721, 7
        %v2723 = vsub.s32 %v2720, %v2722
        %v2724 = vrot.slane %v2717, %v2723
        %v2725 = vcombine.low %v2435, %v2439
        %v2727 = vunpack.c.l.s4 1983009808
        %v2728 = vunpack.c.0.s8 %v2727
        %v2729 = vlaneseq
        %v2730 = vshrl.u32 %v2729, 7
        %v2731 = vsub.s32 %v2728, %v2730
        %v2732 = vrot.slane %v2725, %v2731
        %v2733 = vcombine.low %v2051, %v2053
        %v2735 = vunpack.c.l.s4 1983009808
        %v2736 = vunpack.c.0.s8 %v2735
        %v2737 = vlaneseq
        %v2738 = vshrl.u32 %v2737, 7
        %v2739 = vsub.s32 %v2736, %v2738
        %v2740 = vrot.slane %v2733, %v2739
        %v2741 = vcombine.low %v2443, %v2447
        %v2743 = vunpack.c.l.s4 1983009808
        %v2744 = vunpack.c.0.s8 %v2743
        %v2745 = vlaneseq
        %v2746 = vshrl.u32 %v2745, 7
        %v2747 = vsub.s32 %v2744, %v2746
        %v2748 = vrot.slane %v2741, %v2747
        %v2749 = vcombine.low %v2724, %v2732
        %v2750 = vcombine.high %v2724, %v2732
        %v2752 = vunpack.c.l.s4 1934713408
        %v2753 = vunpack.c.0.s8 %v2752
        %v2754 = vlaneseq
        %v2755 = vshrl.u32 %v2754, 7
        %v2756 = vsub.s32 %v2753, %v2755
        %v2757 = vrot.slane %v2749, %v2756
        %v2759 = vunpack.c.l.s4 1934713408
        %v2760 = vunpack.c.0.s8 %v2759
        %v2761 = vlaneseq
        %v2762 = vshrl.u32 %v2761, 7
        %v2763 = vsub.s32 %v2760, %v2762
        %v2764 = vrot.slane %v2750, %v2763
        %v2765 = vcombine.low %v2740, %v2748
        %v2766 = vcombine.high %v2740, %v2748
        %v2768 = vunpack.c.l.s4 1934713408
        %v2769 = vunpack.c.0.s8 %v2768
        %v2770 = vlaneseq
        %v2771 = vshrl.u32 %v2770, 7
        %v2772 = vsub.s32 %v2769, %v2771
        %v2773 = vrot.slane %v2765, %v2772
        %v2775 = vunpack.c.l.s4 1934713408
        %v2776 = vunpack.c.0.s8 %v2775
        %v2777 = vlaneseq
        %v2778 = vshrl.u32 %v2777, 7
        %v2779 = vsub.s32 %v2776, %v2778
        %v2780 = vrot.slane %v2766, %v2779
        %v2781 = vcombine.low %v2757, %v2773
        %v2782 = vcombine.high %v2757, %v2773
        %v2783 = vcombine.low %v2764, %v2780
        %v2784 = vcombine.high %v2764, %v2780
        %v2785 = vcombine.low %v2092, %v2094
        %v2787 = vunpack.c.l.s4 1983009808
        %v2788 = vunpack.c.0.s8 %v2787
        %v2789 = vlaneseq
        %v2790 = vshrl.u32 %v2789, 7
        %v2791 = vsub.s32 %v2788, %v2790
        %v2792 = vrot.slane %v2785, %v2791
        %v2793 = vcombine.low %v2451, %v2455
        %v2795 = vunpack.c.l.s4 1983009808
        %v2796 = vunpack.c.0.s8 %v2795
        %v2797 = vlaneseq
        %v2798 = vshrl.u32 %v2797, 7
        %v2799 = vsub.s32 %v2796, %v2798
        %v2800 = vrot.slane %v2793, %v2799
        %v2801 = vcombine.low %v2133, %v2135
        %v2803 = vunpack.c.l.s4 1983009808
        %v2804 = vunpack.c.0.s8 %v2803
        %v2805 = vlaneseq
        %v2806 = vshrl.u32 %v2805, 7
        %v2807 = vsub.s32 %v2804, %v2806
        %v2808 = vrot.slane %v2801, %v2807
        %v2809 = vcombine.low %v2459, %v2463
        %v2811 = vunpack.c.l.s4 1983009808
        %v2812 = vunpack.c.0.s8 %v2811
        %v2813 = vlaneseq
        %v2814 = vshrl.u32 %v2813, 7
        %v2815 = vsub.s32 %v2812, %v2814
        %v2816 = vrot.slane %v2809, %v2815
        %v2817 = vcombine.low %v2792, %v2800
        %v2818 = vcombine.high %v2792, %v2800
        %v2820 = vunpack.c.l.s4 1934713408
        %v2821 = vunpack.c.0.s8 %v2820
        %v2822 = vlaneseq
        %v2823 = vshrl.u32 %v2822, 7
        %v2824 = vsub.s32 %v2821, %v2823
        %v2825 = vrot.slane %v2817, %v2824
        %v2827 = vunpack.c.l.s4 1934713408
        %v2828 = vunpack.c.0.s8 %v2827
        %v2829 = vlaneseq
        %v2830 = vshrl.u32 %v2829, 7
        %v2831 = vsub.s32 %v2828, %v2830
        %v2832 = vrot.slane %v2818, %v2831
        %v2833 = vcombine.low %v2808, %v2816
        %v2834 = vcombine.high %v2808, %v2816
        %v2836 = vunpack.c.l.s4 1934713408
        %v2837 = vunpack.c.0.s8 %v2836
        %v2838 = vlaneseq
        %v2839 = vshrl.u32 %v2838, 7
        %v2840 = vsub.s32 %v2837, %v2839
        %v2841 = vrot.slane %v2833, %v2840
        %v2843 = vunpack.c.l.s4 1934713408
        %v2844 = vunpack.c.0.s8 %v2843
        %v2845 = vlaneseq
        %v2846 = vshrl.u32 %v2845, 7
        %v2847 = vsub.s32 %v2844, %v2846
        %v2848 = vrot.slane %v2834, %v2847
        %v2849 = vcombine.low %v2825, %v2841
        %v2850 = vcombine.high %v2825, %v2841
        %v2851 = vcombine.low %v2832, %v2848
        %v2852 = vcombine.high %v2832, %v2848
        %v2853 = vcombine.low %v2174, %v2176
        %v2855 = vunpack.c.l.s4 1983009808
        %v2856 = vunpack.c.0.s8 %v2855
        %v2857 = vlaneseq
        %v2858 = vshrl.u32 %v2857, 7
        %v2859 = vsub.s32 %v2856, %v2858
        %v2860 = vrot.slane %v2853, %v2859
        %v2861 = vcombine.low %v2467, %v2471
        %v2863 = vunpack.c.l.s4 1983009808
        %v2864 = vunpack.c.0.s8 %v2863
        %v2865 = vlaneseq
        %v2866 = vshrl.u32 %v2865, 7
        %v2867 = vsub.s32 %v2864, %v2866
        %v2868 = vrot.slane %v2861, %v2867
        %v2869 = vcombine.low %v2215, %v2217
        %v2871 = vunpack.c.l.s4 1983009808
        %v2872 = vunpack.c.0.s8 %v2871
        %v2873 = vlaneseq
        %v2874 = vshrl.u32 %v2873, 7
        %v2875 = vsub.s32 %v2872, %v2874
        %v2876 = vrot.slane %v2869, %v2875
        %v2877 = vcombine.low %v2475, %v2479
        %v2879 = vunpack.c.l.s4 1983009808
        %v2880 = vunpack.c.0.s8 %v2879
        %v2881 = vlaneseq
        %v2882 = vshrl.u32 %v2881, 7
        %v2883 = vsub.s32 %v2880, %v2882
        %v2884 = vrot.slane %v2877, %v2883
        %v2885 = vcombine.low %v2860, %v2868
        %v2886 = vcombine.high %v2860, %v2868
        %v2888 = vunpack.c.l.s4 1934713408
        %v2889 = vunpack.c.0.s8 %v2888
        %v2890 = vlaneseq
        %v2891 = vshrl.u32 %v2890, 7
        %v2892 = vsub.s32 %v2889, %v2891
        %v2893 = vrot.slane %v2885, %v2892
        %v2895 = vunpack.c.l.s4 1934713408
        %v2896 = vunpack.c.0.s8 %v2895
        %v2897 = vlaneseq
        %v2898 = vshrl.u32 %v2897, 7
        %v2899 = vsub.s32 %v2896, %v2898
        %v2900 = vrot.slane %v2886, %v2899
        %v2901 = vcombine.low %v2876, %v2884
        %v2902 = vcombine.high %v2876, %v2884
        %v2904 = vunpack.c.l.s4 1934713408
        %v2905 = vunpack.c.0.s8 %v2904
        %v2906 = vlaneseq
        %v2907 = vshrl.u32 %v2906, 7
        %v2908 = vsub.s32 %v2905, %v2907
        %v2909 = vrot.slane %v2901, %v2908
        %v2911 = vunpack.c.l.s4 1934713408
        %v2912 = vunpack.c.0.s8 %v2911
        %v2913 = vlaneseq
        %v2914 = vshrl.u32 %v2913, 7
        %v2915 = vsub.s32 %v2912, %v2914
        %v2916 = vrot.slane %v2902, %v2915
        %v2917 = vcombine.low %v2893, %v2909
        %v2918 = vcombine.high %v2893, %v2909
        %v2919 = vcombine.low %v2900, %v2916
        %v2920 = vcombine.high %v2900, %v2916
        %v2921 = vcombine.low %v2256, %v2258
        %v2923 = vunpack.c.l.s4 1983009808
        %v2924 = vunpack.c.0.s8 %v2923
        %v2925 = vlaneseq
        %v2926 = vshrl.u32 %v2925, 7
        %v2927 = vsub.s32 %v2924, %v2926
        %v2928 = vrot.slane %v2921, %v2927
        %v2929 = vcombine.low %v2483, %v2487
        %v2931 = vunpack.c.l.s4 1983009808
        %v2932 = vunpack.c.0.s8 %v2931
        %v2933 = vlaneseq
        %v2934 = vshrl.u32 %v2933, 7
        %v2935 = vsub.s32 %v2932, %v2934
        %v2936 = vrot.slane %v2929, %v2935
        %v2937 = vcombine.low %v2297, %v2299
        %v2939 = vunpack.c.l.s4 1983009808
        %v2940 = vunpack.c.0.s8 %v2939
        %v2941 = vlaneseq
        %v2942 = vshrl.u32 %v2941, 7
        %v2943 = vsub.s32 %v2940, %v2942
        %v2944 = vrot.slane %v2937, %v2943
        %v2945 = vcombine.low %v2491, %v2495
        %v2947 = vunpack.c.l.s4 1983009808
        %v2948 = vunpack.c.0.s8 %v2947
        %v2949 = vlaneseq
        %v2950 = vshrl.u32 %v2949, 7
        %v2951 = vsub.s32 %v2948, %v2950
        %v2952 = vrot.slane %v2945, %v2951
        %v2953 = vcombine.low %v2928, %v2936
        %v2954 = vcombine.high %v2928, %v2936
        %v2956 = vunpack.c.l.s4 1934713408
        %v2957 = vunpack.c.0.s8 %v2956
        %v2958 = vlaneseq
        %v2959 = vshrl.u32 %v2958, 7
        %v2960 = vsub.s32 %v2957, %v2959
        %v2961 = vrot.slane %v2953, %v2960
        %v2963 = vunpack.c.l.s4 1934713408
        %v2964 = vunpack.c.0.s8 %v2963
        %v2965 = vlaneseq
        %v2966 = vshrl.u32 %v2965, 7
        %v2967 = vsub.s32 %v2964, %v2966
        %v2968 = vrot.slane %v2954, %v2967
        %v2969 = vcombine.low %v2944, %v2952
        %v2970 = vcombine.high %v2944, %v2952
        %v2972 = vunpack.c.l.s4 1934713408
        %v2973 = vunpack.c.0.s8 %v2972
        %v2974 = vlaneseq
        %v2975 = vshrl.u32 %v2974, 7
        %v2976 = vsub.s32 %v2973, %v2975
        %v2977 = vrot.slane %v2969, %v2976
        %v2979 = vunpack.c.l.s4 1934713408
        %v2980 = vunpack.c.0.s8 %v2979
        %v2981 = vlaneseq
        %v2982 = vshrl.u32 %v2981, 7
        %v2983 = vsub.s32 %v2980, %v2982
        %v2984 = vrot.slane %v2970, %v2983
        %v2985 = vcombine.low %v2961, %v2977
        %v2986 = vcombine.high %v2961, %v2977
        %v2987 = vcombine.low %v2968, %v2984
        %v2988 = vcombine.high %v2968, %v2984
        %v2989 = vcombine.low %v2338, %v2340
        %v2991 = vunpack.c.l.s4 1983009808
        %v2992 = vunpack.c.0.s8 %v2991
        %v2993 = vlaneseq
        %v2994 = vshrl.u32 %v2993, 7
        %v2995 = vsub.s32 %v2992, %v2994
        %v2996 = vrot.slane %v2989, %v2995
        %v2997 = vcombine.low %v2499, %v2503
        %v2999 = vunpack.c.l.s4 1983009808
        %v3000 = vunpack.c.0.s8 %v2999
        %v3001 = vlaneseq
        %v3002 = vshrl.u32 %v3001, 7
        %v3003 = vsub.s32 %v3000, %v3002
        %v3004 = vrot.slane %v2997, %v3003
        %v3005 = vcombine.low %v2379, %v2381
        %v3007 = vunpack.c.l.s4 1983009808
        %v3008 = vunpack.c.0.s8 %v3007
        %v3009 = vlaneseq
        %v3010 = vshrl.u32 %v3009, 7
        %v3011 = vsub.s32 %v3008, %v3010
        %v3012 = vrot.slane %v3005, %v3011
        %v3013 = vcombine.low %v2507, %v2511
        %v3015 = vunpack.c.l.s4 1983009808
        %v3016 = vunpack.c.0.s8 %v3015
        %v3017 = vlaneseq
        %v3018 = vshrl.u32 %v3017, 7
        %v3019 = vsub.s32 %v3016, %v3018
        %v3020 = vrot.slane %v3013, %v3019
        %v3021 = vcombine.low %v2996, %v3004
        %v3022 = vcombine.high %v2996, %v3004
        %v3024 = vunpack.c.l.s4 1934713408
        %v3025 = vunpack.c.0.s8 %v3024
        %v3026 = vlaneseq
        %v3027 = vshrl.u32 %v3026, 7
        %v3028 = vsub.s32 %v3025, %v3027
        %v3029 = vrot.slane %v3021, %v3028
        %v3031 = vunpack.c.l.s4 1934713408
        %v3032 = vunpack.c.0.s8 %v3031
        %v3033 = vlaneseq
        %v3034 = vshrl.u32 %v3033, 7
        %v3035 = vsub.s32 %v3032, %v3034
        %v3036 = vrot.slane %v3022, %v3035
        %v3037 = vcombine.low %v3012, %v3020
        %v3038 = vcombine.high %v3012, %v3020
        %v3040 = vunpack.c.l.s4 1934713408
        %v3041 = vunpack.c.0.s8 %v3040
        %v3042 = vlaneseq
        %v3043 = vshrl.u32 %v3042, 7
        %v3044 = vsub.s32 %v3041, %v3043
        %v3045 = vrot.slane %v3037, %v3044
        %v3047 = vunpack.c.l.s4 1934713408
        %v3048 = vunpack.c.0.s8 %v3047
        %v3049 = vlaneseq
        %v3050 = vshrl.u32 %v3049, 7
        %v3051 = vsub.s32 %v3048, %v3050
        %v3052 = vrot.slane %v3038, %v3051
        %v3053 = vcombine.low %v3029, %v3045
        %v3054 = vcombine.high %v3029, %v3045
        %v3055 = vcombine.low %v3036, %v3052
        %v3056 = vcombine.high %v3036, %v3052
        %v3057 = vld [vmem:[%s0] sm:$0xf]
        %v3060 = vunpack.c.l.s4 1966171168
        %v3061 = vunpack.c.0.s8 %v3060
        %v3062 = vlaneseq
        %v3063 = vshrl.u32 %v3062, 7
        %v3064 = vsub.s32 %v3061, %v3063
        %v3065 = vrot.slane %v3057, %v3064
        %v3066 = vcombine.high %v3065, %v3065
        %v3068 = vunpack.c.l.s4 1966171168
        %v3069 = vunpack.c.0.s8 %v3068
        %v3070 = vlaneseq
        %v3071 = vshrl.u32 %v3070, 7
        %v3072 = vsub.s32 %v3069, %v3071
        %v3073 = vrot.slane %v3065, %v3072
        %v3075 = vunpack.c.l.s4 1966171168
        %v3076 = vunpack.c.0.s8 %v3075
        %v3077 = vlaneseq
        %v3078 = vshrl.u32 %v3077, 7
        %v3079 = vsub.s32 %v3076, %v3078
        %v3080 = vrot.slane %v3066, %v3079
        %v3081 = vcombine.high %v3073, %v3073
        %v3082 = vcombine.high %v3080, %v3080
        %v3083 = vlaneseq
        %v3084 = vshrl.u32 %v3083, 7
        %v3085 = vsub.s32 0, %v3084
        %v3086 = vrot.slane %v3073, %v3085
        %v3087 = vlaneseq
        %v3088 = vshrl.u32 %v3087, 7
        %v3089 = vsub.s32 0, %v3088
        %v3090 = vrot.slane %v3080, %v3089
        %v3091 = vlaneseq
        %v3092 = vshrl.u32 %v3091, 7
        %v3093 = vsub.s32 0, %v3092
        %v3094 = vrot.slane %v3081, %v3093
        %v3095 = vlaneseq
        %v3096 = vshrl.u32 %v3095, 7
        %v3097 = vsub.s32 0, %v3096
        %v3098 = vrot.slane %v3082, %v3097
        %v3103 = vmul.f32 %v2577, %v3086
        %v3104 = vmul.f32 %v2645, %v3086
        %v3105 = vmul.f32 %v2713, %v3086
        %v3106 = vmul.f32 %v2781, %v3086
        %v3107 = vmul.f32 %v2849, %v3086
        %v3108 = vmul.f32 %v2917, %v3086
        %v3109 = vmul.f32 %v2985, %v3086
        %v3110 = vmul.f32 %v3053, %v3086
        %v3111 = vmul.f32 %v2578, %v3090
        %v3112 = vmul.f32 %v2646, %v3090
        %v3113 = vmul.f32 %v2714, %v3090
        %v3114 = vmul.f32 %v2782, %v3090
        %v3115 = vmul.f32 %v2850, %v3090
        %v3116 = vmul.f32 %v2918, %v3090
        %v3117 = vmul.f32 %v2986, %v3090
        %v3118 = vmul.f32 %v3054, %v3090
        %v3119 = vmul.f32 %v2579, %v3094
        %v3120 = vmul.f32 %v2647, %v3094
        %v3121 = vmul.f32 %v2715, %v3094
        %v3122 = vmul.f32 %v2783, %v3094
        %v3123 = vmul.f32 %v2851, %v3094
        %v3124 = vmul.f32 %v2919, %v3094
        %v3125 = vmul.f32 %v2987, %v3094
        %v3126 = vmul.f32 %v3055, %v3094
        %v3127 = vmul.f32 %v2580, %v3098
        %v3128 = vmul.f32 %v2648, %v3098
        %v3129 = vmul.f32 %v2716, %v3098
        %v3130 = vmul.f32 %v2784, %v3098
        %v3131 = vmul.f32 %v2852, %v3098
        %v3132 = vmul.f32 %v2920, %v3098
        %v3133 = vmul.f32 %v2988, %v3098
        %v3134 = vmul.f32 %v3056, %v3098
        %vm3135 = vcmask 523264
        %v3136 = vsel %vm3135, %v3103, 0.0
        %3137 = vadd.xlane.f32.xlu0 %v3136
        %v3138 = vpop.xlane.xlu0 %3137
        %v3139 = vsel %vm3135, %v3104, 0.0
        %3140 = vadd.xlane.f32.xlu0 %v3139
        %v3141 = vpop.xlane.xlu0 %3140
        %v3142 = vsel %vm3135, %v3105, 0.0
        %3143 = vadd.xlane.f32.xlu0 %v3142
        %v3144 = vpop.xlane.xlu0 %3143
        %v3145 = vsel %vm3135, %v3106, 0.0
        %3146 = vadd.xlane.f32.xlu0 %v3145
        %v3147 = vpop.xlane.xlu0 %3146
        %v3148 = vsel %vm3135, %v3107, 0.0
        %3149 = vadd.xlane.f32.xlu0 %v3148
        %v3150 = vpop.xlane.xlu0 %3149
        %v3151 = vsel %vm3135, %v3108, 0.0
        %3152 = vadd.xlane.f32.xlu0 %v3151
        %v3153 = vpop.xlane.xlu0 %3152
        %v3154 = vsel %vm3135, %v3109, 0.0
        %3155 = vadd.xlane.f32.xlu0 %v3154
        %v3156 = vpop.xlane.xlu0 %3155
        %v3157 = vsel %vm3135, %v3110, 0.0
        %3158 = vadd.xlane.f32.xlu0 %v3157
        %v3159 = vpop.xlane.xlu0 %3158
        %v3160 = vsel %vm3135, %v3111, 0.0
        %3161 = vadd.xlane.f32.xlu0 %v3160
        %v3162 = vpop.xlane.xlu0 %3161
        %v3163 = vsel %vm3135, %v3112, 0.0
        %3164 = vadd.xlane.f32.xlu0 %v3163
        %v3165 = vpop.xlane.xlu0 %3164
        %v3166 = vsel %vm3135, %v3113, 0.0
        %3167 = vadd.xlane.f32.xlu0 %v3166
        %v3168 = vpop.xlane.xlu0 %3167
        %v3169 = vsel %vm3135, %v3114, 0.0
        %3170 = vadd.xlane.f32.xlu0 %v3169
        %v3171 = vpop.xlane.xlu0 %3170
        %v3172 = vsel %vm3135, %v3115, 0.0
        %3173 = vadd.xlane.f32.xlu0 %v3172
        %v3174 = vpop.xlane.xlu0 %3173
        %v3175 = vsel %vm3135, %v3116, 0.0
        %3176 = vadd.xlane.f32.xlu0 %v3175
        %v3177 = vpop.xlane.xlu0 %3176
        %v3178 = vsel %vm3135, %v3117, 0.0
        %3179 = vadd.xlane.f32.xlu0 %v3178
        %v3180 = vpop.xlane.xlu0 %3179
        %v3181 = vsel %vm3135, %v3118, 0.0
        %3182 = vadd.xlane.f32.xlu0 %v3181
        %v3183 = vpop.xlane.xlu0 %3182
        %v3184 = vsel %vm3135, %v3119, 0.0
        %3185 = vadd.xlane.f32.xlu0 %v3184
        %v3186 = vpop.xlane.xlu0 %3185
        %v3187 = vsel %vm3135, %v3120, 0.0
        %3188 = vadd.xlane.f32.xlu0 %v3187
        %v3189 = vpop.xlane.xlu0 %3188
        %v3190 = vsel %vm3135, %v3121, 0.0
        %3191 = vadd.xlane.f32.xlu0 %v3190
        %v3192 = vpop.xlane.xlu0 %3191
        %v3193 = vsel %vm3135, %v3122, 0.0
        %3194 = vadd.xlane.f32.xlu0 %v3193
        %v3195 = vpop.xlane.xlu0 %3194
        %v3196 = vsel %vm3135, %v3123, 0.0
        %3197 = vadd.xlane.f32.xlu0 %v3196
        %v3198 = vpop.xlane.xlu0 %3197
        %v3199 = vsel %vm3135, %v3124, 0.0
        %3200 = vadd.xlane.f32.xlu0 %v3199
        %v3201 = vpop.xlane.xlu0 %3200
        %v3202 = vsel %vm3135, %v3125, 0.0
        %3203 = vadd.xlane.f32.xlu0 %v3202
        %v3204 = vpop.xlane.xlu0 %3203
        %v3205 = vsel %vm3135, %v3126, 0.0
        %3206 = vadd.xlane.f32.xlu0 %v3205
        %v3207 = vpop.xlane.xlu0 %3206
        %v3208 = vsel %vm3135, %v3127, 0.0
        %3209 = vadd.xlane.f32.xlu0 %v3208
        %v3210 = vpop.xlane.xlu0 %3209
        %v3211 = vsel %vm3135, %v3128, 0.0
        %3212 = vadd.xlane.f32.xlu0 %v3211
        %v3213 = vpop.xlane.xlu0 %3212
        %v3214 = vsel %vm3135, %v3129, 0.0
        %3215 = vadd.xlane.f32.xlu0 %v3214
        %v3216 = vpop.xlane.xlu0 %3215
        %v3217 = vsel %vm3135, %v3130, 0.0
        %3218 = vadd.xlane.f32.xlu0 %v3217
        %v3219 = vpop.xlane.xlu0 %3218
        %v3220 = vsel %vm3135, %v3131, 0.0
        %3221 = vadd.xlane.f32.xlu0 %v3220
        %v3222 = vpop.xlane.xlu0 %3221
        %v3223 = vsel %vm3135, %v3132, 0.0
        %3224 = vadd.xlane.f32.xlu0 %v3223
        %v3225 = vpop.xlane.xlu0 %3224
        %v3226 = vsel %vm3135, %v3133, 0.0
        %3227 = vadd.xlane.f32.xlu0 %v3226
        %v3228 = vpop.xlane.xlu0 %3227
        %v3229 = vsel %vm3135, %v3134, 0.0
        %3230 = vadd.xlane.f32.xlu0 %v3229
        %v3231 = vpop.xlane.xlu0 %3230
        %v3264 = vlaneseq
        %v3265 = vand.u32 %v3264, 127
        %v3266 = vlaneseq
        %v3267 = vshrl.u32 %v3266, 7
        %v3268 = vsub.s32 %v3265, %v3267
        %v3269 = vrot.slane %v3138, %v3268
        %v3270 = vadd.s32 %v3265, 4294967288
        %v3271 = vlaneseq
        %v3272 = vshrl.u32 %v3271, 7
        %v3273 = vsub.s32 %v3270, %v3272
        %v3274 = vrot.slane %v3141, %v3273
        %vm3275 = vcmask 130112
        %v3276 = vsel %vm3275, %v3274, %v3269
        %v3277 = vadd.s32 %v3265, 4294967280
        %v3278 = vlaneseq
        %v3279 = vshrl.u32 %v3278, 7
        %v3280 = vsub.s32 %v3277, %v3279
        %v3281 = vrot.slane %v3144, %v3280
        %vm3282 = vcmask 195712
        %v3283 = vsel %vm3282, %v3281, %v3276
        %v3284 = vadd.s32 %v3265, 4294967272
        %v3285 = vlaneseq
        %v3286 = vshrl.u32 %v3285, 7
        %v3287 = vsub.s32 %v3284, %v3286
        %v3288 = vrot.slane %v3147, %v3287
        %vm3289 = vcmask 261312
        %v3290 = vsel %vm3289, %v3288, %v3283
        %v3291 = vadd.s32 %v3265, 4294967264
        %v3292 = vlaneseq
        %v3293 = vshrl.u32 %v3292, 7
        %v3294 = vsub.s32 %v3291, %v3293
        %v3295 = vrot.slane %v3150, %v3294
        %vm3296 = vcmask 326912
        %v3297 = vsel %vm3296, %v3295, %v3290
        %v3298 = vadd.s32 %v3265, 4294967256
        %v3299 = vlaneseq
        %v3300 = vshrl.u32 %v3299, 7
        %v3301 = vsub.s32 %v3298, %v3300
        %v3302 = vrot.slane %v3153, %v3301
        %vm3303 = vcmask 392512
        %v3304 = vsel %vm3303, %v3302, %v3297
        %v3305 = vadd.s32 %v3265, 4294967248
        %v3306 = vlaneseq
        %v3307 = vshrl.u32 %v3306, 7
        %v3308 = vsub.s32 %v3305, %v3307
        %v3309 = vrot.slane %v3156, %v3308
        %vm3310 = vcmask 458112
        %v3311 = vsel %vm3310, %v3309, %v3304
        %v3312 = vadd.s32 %v3265, 4294967240
        %v3313 = vlaneseq
        %v3314 = vshrl.u32 %v3313, 7
        %v3315 = vsub.s32 %v3312, %v3314
        %v3316 = vrot.slane %v3159, %v3315
        %vm3317 = vcmask 523712
        %v3318 = vsel %vm3317, %v3316, %v3311
        %v3319 = vlaneseq
        %v3320 = vshrl.u32 %v3319, 7
        %v3321 = vsub.s32 %v3265, %v3320
        %v3322 = vrot.slane %v3162, %v3321
        %v3323 = vlaneseq
        %v3324 = vshrl.u32 %v3323, 7
        %v3325 = vsub.s32 %v3270, %v3324
        %v3326 = vrot.slane %v3165, %v3325
        %v3327 = vsel %vm3275, %v3326, %v3322
        %v3328 = vlaneseq
        %v3329 = vshrl.u32 %v3328, 7
        %v3330 = vsub.s32 %v3277, %v3329
        %v3331 = vrot.slane %v3168, %v3330
        %v3332 = vsel %vm3282, %v3331, %v3327
        %v3333 = vlaneseq
        %v3334 = vshrl.u32 %v3333, 7
        %v3335 = vsub.s32 %v3284, %v3334
        %v3336 = vrot.slane %v3171, %v3335
        %v3337 = vsel %vm3289, %v3336, %v3332
        %v3338 = vlaneseq
        %v3339 = vshrl.u32 %v3338, 7
        %v3340 = vsub.s32 %v3291, %v3339
        %v3341 = vrot.slane %v3174, %v3340
        %v3342 = vsel %vm3296, %v3341, %v3337
        %v3343 = vlaneseq
        %v3344 = vshrl.u32 %v3343, 7
        %v3345 = vsub.s32 %v3298, %v3344
        %v3346 = vrot.slane %v3177, %v3345
        %v3347 = vsel %vm3303, %v3346, %v3342
        %v3348 = vlaneseq
        %v3349 = vshrl.u32 %v3348, 7
        %v3350 = vsub.s32 %v3305, %v3349
        %v3351 = vrot.slane %v3180, %v3350
        %v3352 = vsel %vm3310, %v3351, %v3347
        %v3353 = vlaneseq
        %v3354 = vshrl.u32 %v3353, 7
        %v3355 = vsub.s32 %v3312, %v3354
        %v3356 = vrot.slane %v3183, %v3355
        %v3357 = vsel %vm3317, %v3356, %v3352
        %v3358 = vlaneseq
        %v3359 = vshrl.u32 %v3358, 7
        %v3360 = vsub.s32 %v3265, %v3359
        %v3361 = vrot.slane %v3186, %v3360
        %v3362 = vlaneseq
        %v3363 = vshrl.u32 %v3362, 7
        %v3364 = vsub.s32 %v3270, %v3363
        %v3365 = vrot.slane %v3189, %v3364
        %v3366 = vsel %vm3275, %v3365, %v3361
        %v3367 = vlaneseq
        %v3368 = vshrl.u32 %v3367, 7
        %v3369 = vsub.s32 %v3277, %v3368
        %v3370 = vrot.slane %v3192, %v3369
        %v3371 = vsel %vm3282, %v3370, %v3366
        %v3372 = vlaneseq
        %v3373 = vshrl.u32 %v3372, 7
        %v3374 = vsub.s32 %v3284, %v3373
        %v3375 = vrot.slane %v3195, %v3374
        %v3376 = vsel %vm3289, %v3375, %v3371
        %v3377 = vlaneseq
        %v3378 = vshrl.u32 %v3377, 7
        %v3379 = vsub.s32 %v3291, %v3378
        %v3380 = vrot.slane %v3198, %v3379
        %v3381 = vsel %vm3296, %v3380, %v3376
        %v3382 = vlaneseq
        %v3383 = vshrl.u32 %v3382, 7
        %v3384 = vsub.s32 %v3298, %v3383
        %v3385 = vrot.slane %v3201, %v3384
        %v3386 = vsel %vm3303, %v3385, %v3381
        %v3387 = vlaneseq
        %v3388 = vshrl.u32 %v3387, 7
        %v3389 = vsub.s32 %v3305, %v3388
        %v3390 = vrot.slane %v3204, %v3389
        %v3391 = vsel %vm3310, %v3390, %v3386
        %v3392 = vlaneseq
        %v3393 = vshrl.u32 %v3392, 7
        %v3394 = vsub.s32 %v3312, %v3393
        %v3395 = vrot.slane %v3207, %v3394
        %v3396 = vsel %vm3317, %v3395, %v3391
        %v3397 = vlaneseq
        %v3398 = vshrl.u32 %v3397, 7
        %v3399 = vsub.s32 %v3265, %v3398
        %v3400 = vrot.slane %v3210, %v3399
        %v3401 = vlaneseq
        %v3402 = vshrl.u32 %v3401, 7
        %v3403 = vsub.s32 %v3270, %v3402
        %v3404 = vrot.slane %v3213, %v3403
        %v3405 = vsel %vm3275, %v3404, %v3400
        %v3406 = vlaneseq
        %v3407 = vshrl.u32 %v3406, 7
        %v3408 = vsub.s32 %v3277, %v3407
        %v3409 = vrot.slane %v3216, %v3408
        %v3410 = vsel %vm3282, %v3409, %v3405
        %v3411 = vlaneseq
        %v3412 = vshrl.u32 %v3411, 7
        %v3413 = vsub.s32 %v3284, %v3412
        %v3414 = vrot.slane %v3219, %v3413
        %v3415 = vsel %vm3289, %v3414, %v3410
        %v3416 = vlaneseq
        %v3417 = vshrl.u32 %v3416, 7
        %v3418 = vsub.s32 %v3291, %v3417
        %v3419 = vrot.slane %v3222, %v3418
        %v3420 = vsel %vm3296, %v3419, %v3415
        %v3421 = vlaneseq
        %v3422 = vshrl.u32 %v3421, 7
        %v3423 = vsub.s32 %v3298, %v3422
        %v3424 = vrot.slane %v3225, %v3423
        %v3425 = vsel %vm3303, %v3424, %v3420
        %v3426 = vlaneseq
        %v3427 = vshrl.u32 %v3426, 7
        %v3428 = vsub.s32 %v3305, %v3427
        %v3429 = vrot.slane %v3228, %v3428
        %v3430 = vsel %vm3310, %v3429, %v3425
        %v3431 = vlaneseq
        %v3432 = vshrl.u32 %v3431, 7
        %v3433 = vsub.s32 %v3312, %v3432
        %v3434 = vrot.slane %v3231, %v3433
        %v3435 = vsel %vm3317, %v3434, %v3430
        %vm3436 = vcmask 1041409
        %v3437 = vsel %vm3436, %v3357, %v3318
        %vm3438 = vcmask 1042434
        %v3439 = vsel %vm3438, %v3396, %v3437
        %vm3440 = vcmask 1043459
        %v3441 = vsel %vm3440, %v3435, %v3439
        %vm3443 = vcmask 519168
        %3444 = vst.msk [vmem:[%s189] sm:$0xf] %vm3443, %v3441
        %p3445 = scmp.lt.s32.totalorder %s17, 1
        %s3446 = scalar_select %p3445, %s17, 1
        %s3447 = smul.addr %s3446, 4
        %s3448 = scalar_lea.vmem %s3, %s3447
        // Predicated region
        $region37: #{policy_net_forward.1} parent=31 // pred_check
          %p3449 = pneg %p103
        $region38: #{policy_net_forward.1} parent=31 // pred_check_branch
          %3451 = sbr.rel (%p3449) target = $region40
        $region39: #{policy_net_forward.1} parent=31 // pred_region
          _
        $region40: #{policy_net_forward.1} parent=31 // pred_fallthru
          _
      $region32: #{policy_net_forward.1} parent=5 // pred_fallthru
        _
      %p3452 = scmp.le.s32.totalorder 2, %s12
      // Predicated region
      $region41: #{policy_net_forward.1} parent=5 // pred_check
        %p3453 = pneg %p3452
      $region42: #{policy_net_forward.1} parent=5 // pred_check_branch
        %3455 = sbr.rel (%p3453) target = $region44
      $region43: #{policy_net_forward.1} parent=5 // pred_region
        %s3456 = ssub.s32 %s12, 2
        // Predicated region
        $region45: #{policy_net_forward.1} parent=43 // pred_check
          %p3457 = pneg %p109
        $region46: #{policy_net_forward.1} parent=43 // pred_check_branch
          %3459 = sbr.rel (%p3457) target = $region48
        $region47: #{policy_net_forward.1} parent=43 // pred_region
          %p3460 = scmp.lt.s32.totalorder %s18, 1
          %s3461 = scalar_select %p3460, %s18, 1
          %s3462 = smul.addr %s3461, 4
          %s3463 = scalar_lea.vmem %s3, %s3462
        $region48: #{policy_net_forward.1} parent=43 // pred_fallthru
          _
      $region44: #{policy_net_forward.1} parent=5 // pred_fallthru
        _
    $region6: #{policy_net_forward.1} parent=1 // loop_footer
      %s16 = sadd.s32 1, %s12
    $region7: #{policy_net_forward.1} parent=1 // loop_footer_branch
      %11 = sbr.rel target = $region3
    $region8: #{policy_net_forward.1} parent=1 // loop_exit
      _
    %3464 = vsyncpa [#allocation3], 1
    %s3465 = scalar_lea.sflag [#allocation3], 1
    %3466 = vsyncpa %s3465, 1

</llo_original>
